<compile_context>
chip_gen: v7x
topology: tpu7x:2x2x1
jax: 0.10.0
libtpu: 0.0.40
codegen_flags: <defaults>
</compile_context>

<pallas_src>
import functools

import jax
import jax.numpy as jnp
from jax.experimental import pallas as pl
from jax.experimental.pallas import tpu as pltpu


# ----------------------------- Pallas kernel -------------------------------

def mhsa_kernel(x_ref, wqkv_ref, bqkv_ref, wproj_ref, bproj_ref, o_ref,
                qkv_ref, ctx_ref, *, num_heads):
    Bb, N, D = x_ref.shape                 # one batch block
    H = num_heads
    hd = D // H
    M = Bb * N
    scale = 1.0 / float(hd) ** 0.5

    # --- fused QKV projection ---------------------------------------------
    # One (M, D) @ (D, 3D) MXU matmul: lane-dense 384-wide output, 128-deep
    # contraction, batch rows folded in.  No broadcast of x, no per-head
    # matmuls.  Columns of wqkv are ordered [s][h][e] (PyTorch qkv layout).
    x2d = x_ref[...].reshape(M, D)
    qkv_ref[...] = (
        jnp.dot(x2d, wqkv_ref[...], preferred_element_type=jnp.float32)
        + bqkv_ref[...])

    # --- per-head scaled-dot-product attention ------------------------------
    # Heads are separated by static lane slices of the qkv scratch (no
    # transposes / relayouts of the head axis).  H is small and static, so the
    # Python loop fully unrolls.
    for h in range(H):
        q = qkv_ref[:, 0 * D + h * hd: 0 * D + (h + 1) * hd].reshape(Bb, N, hd)
        k = qkv_ref[:, 1 * D + h * hd: 1 * D + (h + 1) * hd].reshape(Bb, N, hd)
        v = qkv_ref[:, 2 * D + h * hd: 2 * D + (h + 1) * hd].reshape(Bb, N, hd)

        s = jnp.einsum('bnd,bmd->bnm', q, k,
                       preferred_element_type=jnp.float32) * scale   # (Bb,N,N)
        s = s - jnp.max(s, axis=-1, keepdims=True)
        p = jnp.exp(s)
        p = p / jnp.sum(p, axis=-1, keepdims=True)      # exact softmax divide
        ctx = jnp.einsum('bnm,bmd->bnd', p, v,
                         preferred_element_type=jnp.float32)          # (Bb,N,hd)

        # Assemble a lane-dense (M, D) context: column block h*hd:(h+1)*hd.
        ctx_ref[:, h * hd:(h + 1) * hd] = ctx.reshape(M, hd)

    # --- output projection ---------------------------------------------------
    # Single (M, D) @ (D, D) matmul (K = 128): equivalent to concat-heads @ Wp.
    o2d = (jnp.dot(ctx_ref[...], wproj_ref[...],
                   preferred_element_type=jnp.float32) + bproj_ref[...])
    o_ref[...] = o2d.reshape(Bb, N, D)


# ----------------------------- wrapper --------------------------------------

def _pick_batch_block(batch):
    # Largest divisor of `batch` that still keeps >=2 grid steps:
    #  * v7x: both TensorCores get a block (dimension_semantics=("parallel",)).
    #  * v5e/v6e: blocks are as large as possible (fold batch rows into the
    #    projection matmuls, amortize the ~0.35us per-grid-step overhead).
    if batch < 2:
        return 1
    for bb in range(batch // 2, 0, -1):
        if batch % bb == 0:
            return bb
    return 1


def mhsa_forward(x, params, num_heads, batch_block=None):
    B, N, D = x.shape
    H = num_heads
    assert D % H == 0
    Bb = _pick_batch_block(B) if batch_block is None else batch_block
    assert B % Bb == 0
    M = Bb * N

    wqkv = params['w_qkv']                        # (D, 3D), columns [s][h][e]
    bqkv = params['b_qkv'].reshape(1, 3 * D)
    wproj = params['w_proj']                      # (D, D), rows [h][e]
    bproj = params['b_proj'].reshape(1, D)

    kern = functools.partial(mhsa_kernel, num_heads=H)
    return pl.pallas_call(
        kern,
        out_shape=jax.ShapeDtypeStruct((B, N, D), jnp.float32),
        grid=(B // Bb,),
        in_specs=[
            pl.BlockSpec((Bb, N, D), lambda b: (b, 0, 0)),   # x (batch block)
            pl.BlockSpec((D, 3 * D), lambda b: (0, 0)),      # qkv weight
            pl.BlockSpec((1, 3 * D), lambda b: (0, 0)),      # qkv bias
            pl.BlockSpec((D, D), lambda b: (0, 0)),          # proj weight
            pl.BlockSpec((1, D), lambda b: (0, 0)),          # proj bias
        ],
        out_specs=pl.BlockSpec((Bb, N, D), lambda b: (b, 0, 0)),
        scratch_shapes=[
            pltpu.VMEM((M, 3 * D), jnp.float32),   # fused qkv activations
            pltpu.VMEM((M, D), jnp.float32),       # lane-dense head-concat ctx
        ],
        compiler_params=pltpu.CompilerParams(
            dimension_semantics=("parallel",)),
    )(x, wqkv, bqkv, wproj, bproj)


# ----------------------------- params & reference ---------------------------

def init_params(key, embed_dim):
    k1, k2, k3, k4 = jax.random.split(key, 4)
    s = 1.0 / float(embed_dim) ** 0.5
    return {
        'w_qkv': jax.random.normal(k1, (embed_dim, 3 * embed_dim), jnp.float32) * s,
        'b_qkv': jax.random.normal(k2, (3 * embed_dim,), jnp.float32) * 0.02,
        'w_proj': jax.random.normal(k3, (embed_dim, embed_dim), jnp.float32) * s,
        'b_proj': jax.random.normal(k4, (embed_dim,), jnp.float32) * 0.02,
    }


def mhsa_reference(x, params, num_heads):
    # Mirrors the PyTorch module: qkv -> reshape(B,N,3,H,hd).permute(2,0,3,1,4)
    # -> softmax(q k^T / sqrt(hd)) v -> concat heads -> proj.
    # Uses default matmul precision (same setting as the kernel) so the
    # comparison measures algorithmic agreement, not MXU pass-count choices.
    B, N, C = x.shape
    hd = C // num_heads
    qkv = jnp.dot(x, params['w_qkv']) + params['b_qkv']
    qkv = qkv.reshape(B, N, 3, num_heads, hd).transpose(2, 0, 3, 1, 4)
    q, k, v = qkv[0], qkv[1], qkv[2]                          # (B, H, N, hd)
    s = jnp.einsum('bhnd,bhmd->bhnm', q, k) / hd ** 0.5
    p = jax.nn.softmax(s, axis=-1)
    ctx = jnp.einsum('bhnm,bhmd->bhnd', p, v)
    ctx = ctx.transpose(0, 2, 1, 3).reshape(B, N, C)
    return jnp.dot(ctx, params['w_proj']) + params['b_proj']


# ----------------------------- main ------------------------------------------

if __name__ == "__main__":
    # Small, module-consistent shapes; embed_dim=128 keeps every projection
    # output lane-dense (multiple of 128 lanes).
    batch, seq_len, embed_dim, num_heads = 2, 8, 128, 4

    key = jax.random.PRNGKey(0)
    pkey, xkey = jax.random.split(key)
    params = init_params(pkey, embed_dim)
    x = jax.random.normal(xkey, (batch, seq_len, embed_dim), jnp.float32)

    out = jax.block_until_ready(mhsa_forward(x, params, num_heads))
    assert out.shape == (batch, seq_len, embed_dim), out.shape

    ref = jax.block_until_ready(mhsa_reference(x, params, num_heads))
    # Softmax is exact now; the remaining deviation is MXU bf16-pass rounding
    # of default-precision f32 matmuls (a few 1e-3 absolute at these scales).
    max_err = float(jnp.max(jnp.abs(out - ref)))
    assert jnp.allclose(out, ref, rtol=1e-2, atol=1e-2), max_err

    print("KERNEL_OK")
</pallas_src>

<mosaic_0001>
module attributes {stable_mosaic.version = 11 : i64} {
  func.func @mhsa_kernel(%arg0: i32, %arg1: memref<1x8x128xf32, #tpu.memory_space<vmem>>, %arg2: memref<128x384xf32, #tpu.memory_space<vmem>>, %arg3: memref<1x384xf32, #tpu.memory_space<vmem>>, %arg4: memref<128x128xf32, #tpu.memory_space<vmem>>, %arg5: memref<1x128xf32, #tpu.memory_space<vmem>>, %arg6: memref<1x8x128xf32, #tpu.memory_space<vmem>>, %arg7: memref<8x384xf32, #tpu.memory_space<vmem>>, %arg8: memref<8x128xf32, #tpu.memory_space<vmem>>) attributes {dimension_semantics = [#tpu.dimension_semantics<parallel>], iteration_bounds = array<i64: 2>, scalar_prefetch = 0 : i64, scratch_operands = 2 : i64, tpu.core_type = #tpu.core_type<tc>, window_params = [{transform_indices = @transform_0, window_bounds = array<i64: 1, 8, 128>}, {pipeline_mode = #tpu.pipeline_mode<synchronous>, transform_indices = @transform_1, window_bounds = array<i64: 128, 384>}, {pipeline_mode = #tpu.pipeline_mode<synchronous>, transform_indices = @transform_2, window_bounds = array<i64: 1, 384>}, {pipeline_mode = #tpu.pipeline_mode<synchronous>, transform_indices = @transform_3, window_bounds = array<i64: 128, 128>}, {pipeline_mode = #tpu.pipeline_mode<synchronous>, transform_indices = @transform_4, window_bounds = array<i64: 1, 128>}, {transform_indices = @transform_5, window_bounds = array<i64: 1, 8, 128>}]} {
    %c0 = arith.constant 0 : index
    %c0_0 = arith.constant 0 : index
    %c0_1 = arith.constant 0 : index
    %0 = vector.load %arg1[%c0, %c0_0, %c0_1] : memref<1x8x128xf32, #tpu.memory_space<vmem>>, vector<1x8x128xf32>
    %1 = vector.shape_cast %0 : vector<1x8x128xf32> to vector<8x128xf32>
    %c0_2 = arith.constant 0 : index
    %c0_3 = arith.constant 0 : index
    %2 = vector.load %arg2[%c0_2, %c0_3] : memref<128x384xf32, #tpu.memory_space<vmem>>, vector<128x384xf32>
    %cst = arith.constant dense<0.000000e+00> : vector<8x384xf32>
    %3 = tpu.matmul %1, %2, %cst {dimension_numbers = #tpu.dot_dimension_numbers<[1], [0], [0], [1], [0, 0, 1, 1], [], []>} : vector<8x128xf32>, vector<128x384xf32>, vector<8x384xf32> -> vector<8x384xf32>
    %c0_4 = arith.constant 0 : index
    %c0_5 = arith.constant 0 : index
    %4 = vector.load %arg3[%c0_4, %c0_5] : memref<1x384xf32, #tpu.memory_space<vmem>>, vector<1x384xf32>
    %5 = vector.broadcast %4 : vector<1x384xf32> to vector<8x384xf32>
    %6 = arith.addf %3, %5 : vector<8x384xf32>
    %c0_6 = arith.constant 0 : index
    %c0_7 = arith.constant 0 : index
    %7 = vector.load %arg7[%c0_6, %c0_7] : memref<8x384xf32, #tpu.memory_space<vmem>>, vector<8x384xf32>
    tpu.vector_store %arg7[%c0_6, %c0_7], %6 {strides = array<i32>} : memref<8x384xf32, #tpu.memory_space<vmem>>, vector<8x384xf32>,
    %c0_8 = arith.constant 0 : index
    %c0_9 = arith.constant 0 : index
    %8 = vector.load %arg7[%c0_8, %c0_9] : memref<8x384xf32, #tpu.memory_space<vmem>>, vector<8x32xf32>
    %9 = vector.shape_cast %8 : vector<8x32xf32> to vector<1x8x32xf32>
    %c0_10 = arith.constant 0 : index
    %c128 = arith.constant 128 : index
    %10 = vector.load %arg7[%c0_10, %c128] : memref<8x384xf32, #tpu.memory_space<vmem>>, vector<8x32xf32>
    %11 = vector.shape_cast %10 : vector<8x32xf32> to vector<1x8x32xf32>
    %c0_11 = arith.constant 0 : index
    %c256 = arith.constant 256 : index
    %12 = vector.load %arg7[%c0_11, %c256] : memref<8x384xf32, #tpu.memory_space<vmem>>, vector<8x32xf32>
    %13 = vector.shape_cast %12 : vector<8x32xf32> to vector<1x8x32xf32>
    "tpu.trace_start"() <{level = 10 : i32, message = "bnd,bmd->bnm"}> : () -> ()
    %cst_12 = arith.constant dense<0.000000e+00> : vector<1x8x8xf32>
    %14 = tpu.matmul %9, %11, %cst_12 {dimension_numbers = #tpu.dot_dimension_numbers<[2], [2], [1], [1], [0, 0, 0, 1, 1, 1], [0], [0]>} : vector<1x8x32xf32>, vector<1x8x32xf32>, vector<1x8x8xf32> -> vector<1x8x8xf32>
    "tpu.trace_stop"() : () -> ()
    %cst_13 = arith.constant 0.176776692 : f32
    %15 = vector.broadcast %cst_13 : f32 to vector<1x8x8xf32>
    %16 = arith.mulf %14, %15 : vector<1x8x8xf32>
    %cst_14 = arith.constant dense<0xFF800000> : vector<1x8xf32>
    %17 = vector.multi_reduction <maximumf>, %16, %cst_14 [2] : vector<1x8x8xf32> to vector<1x8xf32>
    %18 = vector.shape_cast %17 : vector<1x8xf32> to vector<1x8x1xf32>
    %19 = vector.broadcast %18 : vector<1x8x1xf32> to vector<1x8x8xf32>
    %20 = arith.subf %16, %19 : vector<1x8x8xf32>
    %21 = math.exp %20 : vector<1x8x8xf32>
    %cst_15 = arith.constant dense<0.000000e+00> : vector<1x8xf32>
    %22 = vector.multi_reduction <add>, %21, %cst_15 [2] : vector<1x8x8xf32> to vector<1x8xf32>
    %23 = vector.shape_cast %22 : vector<1x8xf32> to vector<1x8x1xf32>
    %24 = vector.broadcast %23 : vector<1x8x1xf32> to vector<1x8x8xf32>
    %25 = arith.divf %21, %24 : vector<1x8x8xf32>
    "tpu.trace_start"() <{level = 10 : i32, message = "bnm,bmd->bnd"}> : () -> ()
    %cst_16 = arith.constant dense<0.000000e+00> : vector<1x8x32xf32>
    %26 = tpu.matmul %25, %13, %cst_16 {dimension_numbers = #tpu.dot_dimension_numbers<[2], [1], [1], [2], [0, 0, 0, 1, 1, 2], [0], [0]>} : vector<1x8x8xf32>, vector<1x8x32xf32>, vector<1x8x32xf32> -> vector<1x8x32xf32>
    "tpu.trace_stop"() : () -> ()
    %27 = vector.shape_cast %26 : vector<1x8x32xf32> to vector<8x32xf32>
    %c0_17 = arith.constant 0 : index
    %c0_18 = arith.constant 0 : index
    %28 = vector.load %arg8[%c0_17, %c0_18] : memref<8x128xf32, #tpu.memory_space<vmem>>, vector<8x32xf32>
    tpu.vector_store %arg8[%c0_17, %c0_18], %27 {strides = array<i32>} : memref<8x128xf32, #tpu.memory_space<vmem>>, vector<8x32xf32>,
    %c0_19 = arith.constant 0 : index
    %c32 = arith.constant 32 : index
    %29 = vector.load %arg7[%c0_19, %c32] : memref<8x384xf32, #tpu.memory_space<vmem>>, vector<8x32xf32>
    %30 = vector.shape_cast %29 : vector<8x32xf32> to vector<1x8x32xf32>
    %c0_20 = arith.constant 0 : index
    %c160 = arith.constant 160 : index
    %31 = vector.load %arg7[%c0_20, %c160] : memref<8x384xf32, #tpu.memory_space<vmem>>, vector<8x32xf32>
    %32 = vector.shape_cast %31 : vector<8x32xf32> to vector<1x8x32xf32>
    %c0_21 = arith.constant 0 : index
    %c288 = arith.constant 288 : index
    %33 = vector.load %arg7[%c0_21, %c288] : memref<8x384xf32, #tpu.memory_space<vmem>>, vector<8x32xf32>
    %34 = vector.shape_cast %33 : vector<8x32xf32> to vector<1x8x32xf32>
    "tpu.trace_start"() <{level = 10 : i32, message = "bnd,bmd->bnm"}> : () -> ()
    %cst_22 = arith.constant dense<0.000000e+00> : vector<1x8x8xf32>
    %35 = tpu.matmul %30, %32, %cst_22 {dimension_numbers = #tpu.dot_dimension_numbers<[2], [2], [1], [1], [0, 0, 0, 1, 1, 1], [0], [0]>} : vector<1x8x32xf32>, vector<1x8x32xf32>, vector<1x8x8xf32> -> vector<1x8x8xf32>
    "tpu.trace_stop"() : () -> ()
    %cst_23 = arith.constant 0.176776692 : f32
    %36 = vector.broadcast %cst_23 : f32 to vector<1x8x8xf32>
    %37 = arith.mulf %35, %36 : vector<1x8x8xf32>
    %cst_24 = arith.constant dense<0xFF800000> : vector<1x8xf32>
    %38 = vector.multi_reduction <maximumf>, %37, %cst_24 [2] : vector<1x8x8xf32> to vector<1x8xf32>
    %39 = vector.shape_cast %38 : vector<1x8xf32> to vector<1x8x1xf32>
    %40 = vector.broadcast %39 : vector<1x8x1xf32> to vector<1x8x8xf32>
    %41 = arith.subf %37, %40 : vector<1x8x8xf32>
    %42 = math.exp %41 : vector<1x8x8xf32>
    %cst_25 = arith.constant dense<0.000000e+00> : vector<1x8xf32>
    %43 = vector.multi_reduction <add>, %42, %cst_25 [2] : vector<1x8x8xf32> to vector<1x8xf32>
    %44 = vector.shape_cast %43 : vector<1x8xf32> to vector<1x8x1xf32>
    %45 = vector.broadcast %44 : vector<1x8x1xf32> to vector<1x8x8xf32>
    %46 = arith.divf %42, %45 : vector<1x8x8xf32>
    "tpu.trace_start"() <{level = 10 : i32, message = "bnm,bmd->bnd"}> : () -> ()
    %cst_26 = arith.constant dense<0.000000e+00> : vector<1x8x32xf32>
    %47 = tpu.matmul %46, %34, %cst_26 {dimension_numbers = #tpu.dot_dimension_numbers<[2], [1], [1], [2], [0, 0, 0, 1, 1, 2], [0], [0]>} : vector<1x8x8xf32>, vector<1x8x32xf32>, vector<1x8x32xf32> -> vector<1x8x32xf32>
    "tpu.trace_stop"() : () -> ()
    %48 = vector.shape_cast %47 : vector<1x8x32xf32> to vector<8x32xf32>
    %c0_27 = arith.constant 0 : index
    %c32_28 = arith.constant 32 : index
    %49 = vector.load %arg8[%c0_27, %c32_28] : memref<8x128xf32, #tpu.memory_space<vmem>>, vector<8x32xf32>
    tpu.vector_store %arg8[%c0_27, %c32_28], %48 {strides = array<i32>} : memref<8x128xf32, #tpu.memory_space<vmem>>, vector<8x32xf32>,
    %c0_29 = arith.constant 0 : index
    %c64 = arith.constant 64 : index
    %50 = vector.load %arg7[%c0_29, %c64] : memref<8x384xf32, #tpu.memory_space<vmem>>, vector<8x32xf32>
    %51 = vector.shape_cast %50 : vector<8x32xf32> to vector<1x8x32xf32>
    %c0_30 = arith.constant 0 : index
    %c192 = arith.constant 192 : index
    %52 = vector.load %arg7[%c0_30, %c192] : memref<8x384xf32, #tpu.memory_space<vmem>>, vector<8x32xf32>
    %53 = vector.shape_cast %52 : vector<8x32xf32> to vector<1x8x32xf32>
    %c0_31 = arith.constant 0 : index
    %c320 = arith.constant 320 : index
    %54 = vector.load %arg7[%c0_31, %c320] : memref<8x384xf32, #tpu.memory_space<vmem>>, vector<8x32xf32>
    %55 = vector.shape_cast %54 : vector<8x32xf32> to vector<1x8x32xf32>
    "tpu.trace_start"() <{level = 10 : i32, message = "bnd,bmd->bnm"}> : () -> ()
    %cst_32 = arith.constant dense<0.000000e+00> : vector<1x8x8xf32>
    %56 = tpu.matmul %51, %53, %cst_32 {dimension_numbers = #tpu.dot_dimension_numbers<[2], [2], [1], [1], [0, 0, 0, 1, 1, 1], [0], [0]>} : vector<1x8x32xf32>, vector<1x8x32xf32>, vector<1x8x8xf32> -> vector<1x8x8xf32>
    "tpu.trace_stop"() : () -> ()
    %cst_33 = arith.constant 0.176776692 : f32
    %57 = vector.broadcast %cst_33 : f32 to vector<1x8x8xf32>
    %58 = arith.mulf %56, %57 : vector<1x8x8xf32>
    %cst_34 = arith.constant dense<0xFF800000> : vector<1x8xf32>
    %59 = vector.multi_reduction <maximumf>, %58, %cst_34 [2] : vector<1x8x8xf32> to vector<1x8xf32>
    %60 = vector.shape_cast %59 : vector<1x8xf32> to vector<1x8x1xf32>
    %61 = vector.broadcast %60 : vector<1x8x1xf32> to vector<1x8x8xf32>
    %62 = arith.subf %58, %61 : vector<1x8x8xf32>
    %63 = math.exp %62 : vector<1x8x8xf32>
    %cst_35 = arith.constant dense<0.000000e+00> : vector<1x8xf32>
    %64 = vector.multi_reduction <add>, %63, %cst_35 [2] : vector<1x8x8xf32> to vector<1x8xf32>
    %65 = vector.shape_cast %64 : vector<1x8xf32> to vector<1x8x1xf32>
    %66 = vector.broadcast %65 : vector<1x8x1xf32> to vector<1x8x8xf32>
    %67 = arith.divf %63, %66 : vector<1x8x8xf32>
    "tpu.trace_start"() <{level = 10 : i32, message = "bnm,bmd->bnd"}> : () -> ()
    %cst_36 = arith.constant dense<0.000000e+00> : vector<1x8x32xf32>
    %68 = tpu.matmul %67, %55, %cst_36 {dimension_numbers = #tpu.dot_dimension_numbers<[2], [1], [1], [2], [0, 0, 0, 1, 1, 2], [0], [0]>} : vector<1x8x8xf32>, vector<1x8x32xf32>, vector<1x8x32xf32> -> vector<1x8x32xf32>
    "tpu.trace_stop"() : () -> ()
    %69 = vector.shape_cast %68 : vector<1x8x32xf32> to vector<8x32xf32>
    %c0_37 = arith.constant 0 : index
    %c64_38 = arith.constant 64 : index
    %70 = vector.load %arg8[%c0_37, %c64_38] : memref<8x128xf32, #tpu.memory_space<vmem>>, vector<8x32xf32>
    tpu.vector_store %arg8[%c0_37, %c64_38], %69 {strides = array<i32>} : memref<8x128xf32, #tpu.memory_space<vmem>>, vector<8x32xf32>,
    %c0_39 = arith.constant 0 : index
    %c96 = arith.constant 96 : index
    %71 = vector.load %arg7[%c0_39, %c96] : memref<8x384xf32, #tpu.memory_space<vmem>>, vector<8x32xf32>
    %72 = vector.shape_cast %71 : vector<8x32xf32> to vector<1x8x32xf32>
    %c0_40 = arith.constant 0 : index
    %c224 = arith.constant 224 : index
    %73 = vector.load %arg7[%c0_40, %c224] : memref<8x384xf32, #tpu.memory_space<vmem>>, vector<8x32xf32>
    %74 = vector.shape_cast %73 : vector<8x32xf32> to vector<1x8x32xf32>
    %c0_41 = arith.constant 0 : index
    %c352 = arith.constant 352 : index
    %75 = vector.load %arg7[%c0_41, %c352] : memref<8x384xf32, #tpu.memory_space<vmem>>, vector<8x32xf32>
    %76 = vector.shape_cast %75 : vector<8x32xf32> to vector<1x8x32xf32>
    "tpu.trace_start"() <{level = 10 : i32, message = "bnd,bmd->bnm"}> : () -> ()
    %cst_42 = arith.constant dense<0.000000e+00> : vector<1x8x8xf32>
    %77 = tpu.matmul %72, %74, %cst_42 {dimension_numbers = #tpu.dot_dimension_numbers<[2], [2], [1], [1], [0, 0, 0, 1, 1, 1], [0], [0]>} : vector<1x8x32xf32>, vector<1x8x32xf32>, vector<1x8x8xf32> -> vector<1x8x8xf32>
    "tpu.trace_stop"() : () -> ()
    %cst_43 = arith.constant 0.176776692 : f32
    %78 = vector.broadcast %cst_43 : f32 to vector<1x8x8xf32>
    %79 = arith.mulf %77, %78 : vector<1x8x8xf32>
    %cst_44 = arith.constant dense<0xFF800000> : vector<1x8xf32>
    %80 = vector.multi_reduction <maximumf>, %79, %cst_44 [2] : vector<1x8x8xf32> to vector<1x8xf32>
    %81 = vector.shape_cast %80 : vector<1x8xf32> to vector<1x8x1xf32>
    %82 = vector.broadcast %81 : vector<1x8x1xf32> to vector<1x8x8xf32>
    %83 = arith.subf %79, %82 : vector<1x8x8xf32>
    %84 = math.exp %83 : vector<1x8x8xf32>
    %cst_45 = arith.constant dense<0.000000e+00> : vector<1x8xf32>
    %85 = vector.multi_reduction <add>, %84, %cst_45 [2] : vector<1x8x8xf32> to vector<1x8xf32>
    %86 = vector.shape_cast %85 : vector<1x8xf32> to vector<1x8x1xf32>
    %87 = vector.broadcast %86 : vector<1x8x1xf32> to vector<1x8x8xf32>
    %88 = arith.divf %84, %87 : vector<1x8x8xf32>
    "tpu.trace_start"() <{level = 10 : i32, message = "bnm,bmd->bnd"}> : () -> ()
    %cst_46 = arith.constant dense<0.000000e+00> : vector<1x8x32xf32>
    %89 = tpu.matmul %88, %76, %cst_46 {dimension_numbers = #tpu.dot_dimension_numbers<[2], [1], [1], [2], [0, 0, 0, 1, 1, 2], [0], [0]>} : vector<1x8x8xf32>, vector<1x8x32xf32>, vector<1x8x32xf32> -> vector<1x8x32xf32>
    "tpu.trace_stop"() : () -> ()
    %90 = vector.shape_cast %89 : vector<1x8x32xf32> to vector<8x32xf32>
    %c0_47 = arith.constant 0 : index
    %c96_48 = arith.constant 96 : index
    %91 = vector.load %arg8[%c0_47, %c96_48] : memref<8x128xf32, #tpu.memory_space<vmem>>, vector<8x32xf32>
    tpu.vector_store %arg8[%c0_47, %c96_48], %90 {strides = array<i32>} : memref<8x128xf32, #tpu.memory_space<vmem>>, vector<8x32xf32>,
    %c0_49 = arith.constant 0 : index
    %c0_50 = arith.constant 0 : index
    %92 = vector.load %arg8[%c0_49, %c0_50] : memref<8x128xf32, #tpu.memory_space<vmem>>, vector<8x128xf32>
    %c0_51 = arith.constant 0 : index
    %c0_52 = arith.constant 0 : index
    %93 = vector.load %arg4[%c0_51, %c0_52] : memref<128x128xf32, #tpu.memory_space<vmem>>, vector<128x128xf32>
    %cst_53 = arith.constant dense<0.000000e+00> : vector<8x128xf32>
    %94 = tpu.matmul %92, %93, %cst_53 {dimension_numbers = #tpu.dot_dimension_numbers<[1], [0], [0], [1], [0, 0, 1, 1], [], []>} : vector<8x128xf32>, vector<128x128xf32>, vector<8x128xf32> -> vector<8x128xf32>
    %c0_54 = arith.constant 0 : index
    %c0_55 = arith.constant 0 : index
    %95 = vector.load %arg5[%c0_54, %c0_55] : memref<1x128xf32, #tpu.memory_space<vmem>>, vector<1x128xf32>
    %96 = vector.broadcast %95 : vector<1x128xf32> to vector<8x128xf32>
    %97 = arith.addf %94, %96 : vector<8x128xf32>
    %98 = vector.shape_cast %97 : vector<8x128xf32> to vector<1x8x128xf32>
    %c0_56 = arith.constant 0 : index
    %c0_57 = arith.constant 0 : index
    %c0_58 = arith.constant 0 : index
    %99 = vector.load %arg6[%c0_56, %c0_57, %c0_58] : memref<1x8x128xf32, #tpu.memory_space<vmem>>, vector<1x8x128xf32>
    tpu.vector_store %arg6[%c0_56, %c0_57, %c0_58], %98 {strides = array<i32>} : memref<1x8x128xf32, #tpu.memory_space<vmem>>, vector<1x8x128xf32>,
    return
  }
  func.func @transform_0(%arg0: i32) -> (i32, i32, i32) {
    %c0_i32 = arith.constant 0 : i32
    %c0_i32_0 = arith.constant 0 : i32
    %c0_i32_1 = arith.constant 0 : i32
    return %arg0, %c0_i32, %c0_i32_0 : i32, i32, i32
  }
  func.func @transform_1(%arg0: i32) -> (i32, i32) {
    %c0_i32 = arith.constant 0 : i32
    %c0_i32_0 = arith.constant 0 : i32
    %c0_i32_1 = arith.constant 0 : i32
    return %c0_i32, %c0_i32_0 : i32, i32
  }
  func.func @transform_2(%arg0: i32) -> (i32, i32) {
    %c0_i32 = arith.constant 0 : i32
    %c0_i32_0 = arith.constant 0 : i32
    %c0_i32_1 = arith.constant 0 : i32
    return %c0_i32, %c0_i32_0 : i32, i32
  }
  func.func @transform_3(%arg0: i32) -> (i32, i32) {
    %c0_i32 = arith.constant 0 : i32
    %c0_i32_0 = arith.constant 0 : i32
    %c0_i32_1 = arith.constant 0 : i32
    return %c0_i32, %c0_i32_0 : i32, i32
  }
  func.func @transform_4(%arg0: i32) -> (i32, i32) {
    %c0_i32 = arith.constant 0 : i32
    %c0_i32_0 = arith.constant 0 : i32
    %c0_i32_1 = arith.constant 0 : i32
    return %c0_i32, %c0_i32_0 : i32, i32
  }
  func.func @transform_5(%arg0: i32) -> (i32, i32, i32) {
    %c0_i32 = arith.constant 0 : i32
    %c0_i32_0 = arith.constant 0 : i32
    %c0_i32_1 = arith.constant 0 : i32
    return %arg0, %c0_i32, %c0_i32_0 : i32, i32, i32
  }
}

</mosaic_0001>

<llo_original>
// kernel: tpu_custom_call.1
$region0: #{tpu_custom_call.1}
  #allocation0 [shape = 'u32[]', space=smem, size = 0x4, offset = 0x4, fixed_abs, tag = 'smem constant byte address 0x4 - core index']
  #allocation1 [shape = 'u32[144,128]{1,0:T(1,128)}', space=vmem, size = 0x12000, scoped, tag = 'internal scratch']
  #allocation2 [shape = 'f32[8,384]{1,0:T(8,128)}', space=vmem, size = 0x3000, scoped, tag = 'scratch operand']
  #allocation3 [shape = 'f32[8,128]{1,0:T(8,128)}', space=vmem, size = 0x1000, scoped, tag = 'scratch operand']
  %s0 = inlined_call_operand.hbm [shape: f32[2,8,128], index: 0, kind: input, shape index: {}]
  %s1 = inlined_call_operand.hbm [shape: f32[128,384], index: 1, kind: input, shape index: {}]
  %s2 = inlined_call_operand.vmem [shape: f32[1,384], index: 2, kind: input, shape index: {}]
  %s3 = inlined_call_operand.hbm [shape: f32[128,128], index: 3, kind: input, shape index: {}]
  %s4 = inlined_call_operand.vmem [shape: f32[1,128], index: 4, kind: input, shape index: {}]
  %s5 = inlined_call_operand.hbm [shape: f32[2,8,128], index: 5, kind: output, shape index: {}]
  %s6 = sld [smem:[#allocation0]]
  $region65: #{tpu_custom_call.1} parent=0
    _
  %s8 = ssub.s32 1, %s6
  %s9 = scalar_select 0, %s8, %s6
  $region1: #{tpu_custom_call.1} parent=0
    #allocation4 [shape = 'u8[8192]{0}', space=vmem, size = 0x2000, scoped, tag = 'input window, operand 0']
    #allocation5 [shape = 's32[2]{0}', space=sflag, size = 0x8, scoped, tag = 'scoped memory for tpu_custom_call.1']
    #allocation6 [shape = 's32[2]{0}', space=sflag, size = 0x8, scoped, tag = 'scoped memory for tpu_custom_call.1']
    #allocation7 [shape = 'u8[196608]{0}', space=vmem, size = 0x30000, scoped, tag = 'input window, operand 1, single buffered']
    #allocation8 [shape = 's32[1]{0}', space=sflag, size = 0x4, scoped, tag = 'scoped memory for tpu_custom_call.1']
    #allocation9 [shape = 'u8[65536]{0}', space=vmem, size = 0x10000, scoped, tag = 'input window, operand 3, single buffered']
    #allocation10 [shape = 'u8[8192]{0}', space=vmem, size = 0x2000, scoped, tag = 'output window, operand 0']
    %10 = vsyncpa [#allocation5], 0
    %s11 = scalar_lea.sflag [#allocation5], 1
    %12 = vsyncpa %s11, 0
    %13 = vsyncpa [#allocation8], 0
    %14 = vsyncpa [#allocation6], 0
    %s15 = scalar_lea.sflag [#allocation6], 1
    %16 = vsyncpa %s15, 0
    loop: start=0, step=1, limit=4
    $region2: #{tpu_custom_call.1} parent=1 // loop_pre_header
      _
    $region3: #{tpu_custom_call.1} parent=1 // loop_header
      %s18 = sphi 0, %s22
      %p19 = scmp.ge.s32.totalorder %s18, 4
      %s28 = sphi 0, %s30
      %s31 = sphi 0, %s28
      %s32 = sphi 0, %s31
      %s48 = sphi 0, %s32
      %s52 = sphi 0, %s52
      %s54 = sphi 0, %s52
      %s55 = sphi 0, %s54
      %s69 = sphi 0, %s55
      %s73 = sphi 0, %s73
      %s75 = sphi 0, %s73
      %s76 = sphi 0, %s75
      %s90 = sphi 0, %s76
      %s94 = sphi 0, %s94
      %s96 = sphi 0, %s94
      %s97 = sphi 0, %s96
      %s111 = sphi 0, %s97
      %s115 = sphi 0, %s115
      %s117 = sphi 0, %s115
      %s118 = sphi 0, %s117
      %s132 = sphi 0, %s118
      %s138 = sphi 0, %s140
      %s141 = sphi 0, %s138
      %s142 = sphi 0, %s141
      %s158 = sphi 0, %s142
    $region4: #{tpu_custom_call.1} parent=1 // loop_header_branch
      %21 = sbr.rel (%p19) target = $region8
    $region5: #{tpu_custom_call.1} parent=1 // loop_body
      %s23 = ssub.s32 %s18, 1
      %s24 = ssub.s32 %s18, 2
      %s25 = sadd.s32 %s18, 1
      %s26 = ssub.s32 %s18, %s25
      %p27 = scmp.eq.s32.totalorder %s26, 0
      %s29 = sadd.s32 %s28, 1
      %s30 = scalar_select %p27, %s28, %s29
      %p33 = pneg %p27
      %p34 = scmp.eq.s32.totalorder %s18, 1
      %p35 = por %p33, %p34
      %p36 = scmp.ne.s32.totalorder %s28, %s31
      %p37 = scmp.eq.s32.totalorder %s18, 0
      %p38 = por %p36, %p37
      %p39 = scmp.ne.s32.totalorder %s28, %s31
      %p40 = scmp.eq.s32.totalorder %s23, 1
      %p41 = por %p39, %p40
      %p42 = scmp.ne.s32.totalorder %s31, %s32
      %p43 = scmp.eq.s32.totalorder %s23, 0
      %p44 = por %p42, %p43
      %p45 = scmp.ne.s32.totalorder %s31, %s32
      %p46 = scmp.eq.s32.totalorder %s24, 1
      %p47 = por %p45, %p46
      %p49 = scmp.ne.s32.totalorder %s32, %s48
      %p50 = scmp.eq.s32.totalorder %s24, 0
      %p51 = por %p49, %p50
      %s53 = sadd.s32 %s52, 1
      %p56 = scmp.eq.s32.totalorder %s18, 1
      %p57 = scmp.ne.s32.totalorder %s52, %s54
      %p58 = scmp.eq.s32.totalorder %s18, 0
      %p59 = por %p57, %p58
      %p60 = scmp.ne.s32.totalorder %s52, %s54
      %p61 = scmp.eq.s32.totalorder %s23, 1
      %p62 = por %p60, %p61
      %p63 = scmp.ne.s32.totalorder %s54, %s55
      %p64 = scmp.eq.s32.totalorder %s23, 0
      %p65 = por %p63, %p64
      %p66 = scmp.ne.s32.totalorder %s54, %s55
      %p67 = scmp.eq.s32.totalorder %s24, 1
      %p68 = por %p66, %p67
      %p70 = scmp.ne.s32.totalorder %s55, %s69
      %p71 = scmp.eq.s32.totalorder %s24, 0
      %p72 = por %p70, %p71
      %s74 = sadd.s32 %s73, 1
      %p77 = scmp.eq.s32.totalorder %s18, 1
      %p78 = scmp.ne.s32.totalorder %s73, %s75
      %p79 = scmp.eq.s32.totalorder %s18, 0
      %p80 = por %p78, %p79
      %p81 = scmp.ne.s32.totalorder %s73, %s75
      %p82 = scmp.eq.s32.totalorder %s23, 1
      %p83 = por %p81, %p82
      %p84 = scmp.ne.s32.totalorder %s75, %s76
      %p85 = scmp.eq.s32.totalorder %s23, 0
      %p86 = por %p84, %p85
      %p87 = scmp.ne.s32.totalorder %s75, %s76
      %p88 = scmp.eq.s32.totalorder %s24, 1
      %p89 = por %p87, %p88
      %p91 = scmp.ne.s32.totalorder %s76, %s90
      %p92 = scmp.eq.s32.totalorder %s24, 0
      %p93 = por %p91, %p92
      %s95 = sadd.s32 %s94, 1
      %p98 = scmp.eq.s32.totalorder %s18, 1
      %p99 = scmp.ne.s32.totalorder %s94, %s96
      %p100 = scmp.eq.s32.totalorder %s18, 0
      %p101 = por %p99, %p100
      %p102 = scmp.ne.s32.totalorder %s94, %s96
      %p103 = scmp.eq.s32.totalorder %s23, 1
      %p104 = por %p102, %p103
      %p105 = scmp.ne.s32.totalorder %s96, %s97
      %p106 = scmp.eq.s32.totalorder %s23, 0
      %p107 = por %p105, %p106
      %p108 = scmp.ne.s32.totalorder %s96, %s97
      %p109 = scmp.eq.s32.totalorder %s24, 1
      %p110 = por %p108, %p109
      %p112 = scmp.ne.s32.totalorder %s97, %s111
      %p113 = scmp.eq.s32.totalorder %s24, 0
      %p114 = por %p112, %p113
      %s116 = sadd.s32 %s115, 1
      %p119 = scmp.eq.s32.totalorder %s18, 1
      %p120 = scmp.ne.s32.totalorder %s115, %s117
      %p121 = scmp.eq.s32.totalorder %s18, 0
      %p122 = por %p120, %p121
      %p123 = scmp.ne.s32.totalorder %s115, %s117
      %p124 = scmp.eq.s32.totalorder %s23, 1
      %p125 = por %p123, %p124
      %p126 = scmp.ne.s32.totalorder %s117, %s118
      %p127 = scmp.eq.s32.totalorder %s23, 0
      %p128 = por %p126, %p127
      %p129 = scmp.ne.s32.totalorder %s117, %s118
      %p130 = scmp.eq.s32.totalorder %s24, 1
      %p131 = por %p129, %p130
      %p133 = scmp.ne.s32.totalorder %s118, %s132
      %p134 = scmp.eq.s32.totalorder %s24, 0
      %p135 = por %p133, %p134
      %s136 = ssub.s32 %s18, %s25
      %p137 = scmp.eq.s32.totalorder %s136, 0
      %s139 = sadd.s32 %s138, 1
      %s140 = scalar_select %p137, %s138, %s139
      %p143 = pneg %p137
      %p144 = scmp.eq.s32.totalorder %s18, 1
      %p145 = por %p143, %p144
      %p146 = scmp.ne.s32.totalorder %s138, %s141
      %p147 = scmp.eq.s32.totalorder %s18, 0
      %p148 = por %p146, %p147
      %p149 = scmp.ne.s32.totalorder %s138, %s141
      %p150 = scmp.eq.s32.totalorder %s23, 1
      %p151 = por %p149, %p150
      %p152 = scmp.ne.s32.totalorder %s141, %s142
      %p153 = scmp.eq.s32.totalorder %s23, 0
      %p154 = por %p152, %p153
      %p155 = scmp.ne.s32.totalorder %s141, %s142
      %p156 = scmp.eq.s32.totalorder %s24, 1
      %p157 = por %p155, %p156
      %p159 = scmp.ne.s32.totalorder %s142, %s158
      %p160 = scmp.eq.s32.totalorder %s24, 0
      %p161 = por %p159, %p160
      %p162 = scmp.le.s32.totalorder 1, %s18
      %p163 = scmp.lt.s32.totalorder %s18, 3
      %p164 = pnand %p162, %p163
      %p165 = pneg %p164
      // Predicated region
      $region9: #{tpu_custom_call.1} parent=5 // pred_check
        _
      $region10: #{tpu_custom_call.1} parent=5 // pred_check_branch
        %167 = sbr.rel (%p164) target = $region12
      $region11: #{tpu_custom_call.1} parent=5 // pred_region
        %s168 = ssub.s32 %s18, 1
        // Predicated region
        $region13: #{tpu_custom_call.1} parent=11 // pred_check
          %p169 = pneg %p65
        $region14: #{tpu_custom_call.1} parent=11 // pred_check_branch
          %171 = sbr.rel (%p169) target = $region16
        $region15: #{tpu_custom_call.1} parent=11 // pred_region
          %s173 = ssub.s32 6144, 6144
          %174 = vsyncadd [#allocation8], %s173
          %s175 = sshll.u32 [#allocation7], 4
          %s176 = int_to_ptr.vmem [resolvable:$true] %s175
          %181 = dma.hbm_to_vmem [thread:$0]  %s1, 6144, %s176, [#allocation8], 384, 384, 24
        $region16: #{tpu_custom_call.1} parent=11 // pred_fallthru
          _
        // Predicated region
        $region17: #{tpu_custom_call.1} parent=11 // pred_check
          %p182 = pneg %p86
        $region18: #{tpu_custom_call.1} parent=11 // pred_check_branch
          %184 = sbr.rel (%p182) target = $region20
        $region19: #{tpu_custom_call.1} parent=11 // pred_region
          _
        $region20: #{tpu_custom_call.1} parent=11 // pred_fallthru
          _
        // Predicated region
        $region21: #{tpu_custom_call.1} parent=11 // pred_check
          %p185 = pneg %p107
        $region22: #{tpu_custom_call.1} parent=11 // pred_check_branch
          %187 = sbr.rel (%p185) target = $region24
        $region23: #{tpu_custom_call.1} parent=11 // pred_region
          %s189 = ssub.s32 2048, 2048
          %190 = vsyncadd [#allocation8], %s189
          %s191 = sshll.u32 [#allocation9], 4
          %s192 = int_to_ptr.vmem [resolvable:$true] %s191
          %197 = dma.hbm_to_vmem [thread:$0]  %s3, 2048, %s192, [#allocation8], 128, 128, 8
        $region24: #{tpu_custom_call.1} parent=11 // pred_fallthru
          _
        // Predicated region
        $region25: #{tpu_custom_call.1} parent=11 // pred_check
          %p198 = pneg %p128
        $region26: #{tpu_custom_call.1} parent=11 // pred_check_branch
          %200 = sbr.rel (%p198) target = $region28
        $region27: #{tpu_custom_call.1} parent=11 // pred_region
          _
        $region28: #{tpu_custom_call.1} parent=11 // pred_fallthru
          _
      $region12: #{tpu_custom_call.1} parent=5 // pred_fallthru
        _
      %p201 = scmp.lt.s32.totalorder %s18, 2
      // Predicated region
      $region29: #{tpu_custom_call.1} parent=5 // pred_check
        %p202 = pneg %p201
      $region30: #{tpu_custom_call.1} parent=5 // pred_check_branch
        %204 = sbr.rel (%p202) target = $region32
      $region31: #{tpu_custom_call.1} parent=5 // pred_region
        // Predicated region
        $region33: #{tpu_custom_call.1} parent=31 // pred_check
          %p205 = pneg %p38
        $region34: #{tpu_custom_call.1} parent=31 // pred_check_branch
          %207 = sbr.rel (%p205) target = $region36
        $region35: #{tpu_custom_call.1} parent=31 // pred_region
          %s208 = sand.u32 %s28, 1
          %s209 = scalar_lea.sflag [#allocation5], %s208
          %s210 = sand.u32 %s28, 1
          %s211 = smul.addr %s210, 8
          %s212 = scalar_lea.vmem [#allocation4], %s211
          %s214 = ssub.s32 128, 128
          %215 = vsyncadd %s209, %s214
          %s216 = smul.addr %s18, 128
          %s217 = scalar_lea.hbm %s0, %s216
          %s219 = sshll.u32 %s212, 4
          %s220 = int_to_ptr.vmem [resolvable:$true] %s219
          %222 = dma.hbm_to_vmem [thread:$0]  %s217, 128, %s220, %s209
        $region36: #{tpu_custom_call.1} parent=31 // pred_fallthru
          _
      $region32: #{tpu_custom_call.1} parent=5 // pred_fallthru
        _
      %p223 = scmp.le.s32.totalorder 1, %s18
      %p224 = scmp.lt.s32.totalorder %s18, 3
      %p225 = pnand %p223, %p224
      %p226 = pneg %p225
      // Predicated region
      $region37: #{tpu_custom_call.1} parent=5 // pred_check
        _
      $region38: #{tpu_custom_call.1} parent=5 // pred_check_branch
        %228 = sbr.rel (%p225) target = $region40
      $region39: #{tpu_custom_call.1} parent=5 // pred_region
        %s229 = ssub.s32 %s18, 1
        %s230 = sand.u32 %s31, 1
        %s231 = scalar_lea.sflag [#allocation5], %s230
        %s232 = sand.u32 %s31, 1
        %s233 = smul.addr %s232, 8
        %s234 = scalar_lea.vmem [#allocation4], %s233
        // Predicated region
        $region41: #{tpu_custom_call.1} parent=39 // pred_check
          %p235 = pneg %p44
        $region42: #{tpu_custom_call.1} parent=39 // pred_check_branch
          %237 = sbr.rel (%p235) target = $region44
        $region43: #{tpu_custom_call.1} parent=39 // pred_region
          %238 = dma.done %s231, 128
        $region44: #{tpu_custom_call.1} parent=39 // pred_fallthru
          _
        // Predicated region
        $region45: #{tpu_custom_call.1} parent=39 // pred_check
          %p239 = pneg %p65
        $region46: #{tpu_custom_call.1} parent=39 // pred_check_branch
          %241 = sbr.rel (%p239) target = $region48
        $region47: #{tpu_custom_call.1} parent=39 // pred_region
          %242 = dma.done [#allocation8], 6144
        $region48: #{tpu_custom_call.1} parent=39 // pred_fallthru
          _
        // Predicated region
        $region49: #{tpu_custom_call.1} parent=39 // pred_check
          %p243 = pneg %p107
        $region50: #{tpu_custom_call.1} parent=39 // pred_check_branch
          %245 = sbr.rel (%p243) target = $region52
        $region51: #{tpu_custom_call.1} parent=39 // pred_region
          %246 = dma.done [#allocation8], 2048
        $region52: #{tpu_custom_call.1} parent=39 // pred_fallthru
          _
        %s247 = sand.u32 %s31, 1
        %s248 = scalar_lea.sflag [#allocation5], %s247
        %s249 = sand.u32 %s31, 1
        %s250 = smul.addr %s249, 8
        %s251 = scalar_lea.vmem [#allocation4], %s250
        %p252 = pneg %p44
        %p253 = pneg %p41
        %p254 = pneg %p65
        %p255 = pneg %p62
        %p256 = pneg %p86
        %p257 = pneg %p83
        %p258 = pneg %p107
        %p259 = pneg %p104
        %p260 = pneg %p128
        %p261 = pneg %p125
        %p262 = pneg %p154
        %p263 = pneg %p151
        %s264 = sand.u32 %s141, 1
        %s265 = scalar_lea.sflag [#allocation6], %s264
        %s266 = sand.u32 %s141, 1
        %s267 = smul.addr %s266, 8
        %s268 = scalar_lea.vmem [#allocation10], %s267
        %v269 = vld [vmem:[%s234] sm:$0xff]
        %v270 = vld [vmem:[#allocation7] sm:$0xff]
        %v271 = vld [vmem:[#allocation7 + $0x8] sm:$0xff]
        %v272 = vld [vmem:[#allocation7 + $0x10] sm:$0xff]
        %v273 = vld [vmem:[#allocation7 + $0x18] sm:$0xff]
        %v274 = vld [vmem:[#allocation7 + $0x20] sm:$0xff]
        %v275 = vld [vmem:[#allocation7 + $0x28] sm:$0xff]
        %v276 = vld [vmem:[#allocation7 + $0x30] sm:$0xff]
        %v277 = vld [vmem:[#allocation7 + $0x38] sm:$0xff]
        %v278 = vld [vmem:[#allocation7 + $0x40] sm:$0xff]
        %v279 = vld [vmem:[#allocation7 + $0x48] sm:$0xff]
        %v280 = vld [vmem:[#allocation7 + $0x50] sm:$0xff]
        %v281 = vld [vmem:[#allocation7 + $0x58] sm:$0xff]
        %v282 = vld [vmem:[#allocation7 + $0x60] sm:$0xff]
        %v283 = vld [vmem:[#allocation7 + $0x68] sm:$0xff]
        %v284 = vld [vmem:[#allocation7 + $0x70] sm:$0xff]
        %v285 = vld [vmem:[#allocation7 + $0x78] sm:$0xff]
        %v286 = vld [vmem:[#allocation7 + $0x80] sm:$0xff]
        %v287 = vld [vmem:[#allocation7 + $0x88] sm:$0xff]
        %v288 = vld [vmem:[#allocation7 + $0x90] sm:$0xff]
        %v289 = vld [vmem:[#allocation7 + $0x98] sm:$0xff]
        %v290 = vld [vmem:[#allocation7 + $0xa0] sm:$0xff]
        %v291 = vld [vmem:[#allocation7 + $0xa8] sm:$0xff]
        %v292 = vld [vmem:[#allocation7 + $0xb0] sm:$0xff]
        %v293 = vld [vmem:[#allocation7 + $0xb8] sm:$0xff]
        %v294 = vld [vmem:[#allocation7 + $0xc0] sm:$0xff]
        %v295 = vld [vmem:[#allocation7 + $0xc8] sm:$0xff]
        %v296 = vld [vmem:[#allocation7 + $0xd0] sm:$0xff]
        %v297 = vld [vmem:[#allocation7 + $0xd8] sm:$0xff]
        %v298 = vld [vmem:[#allocation7 + $0xe0] sm:$0xff]
        %v299 = vld [vmem:[#allocation7 + $0xe8] sm:$0xff]
        %v300 = vld [vmem:[#allocation7 + $0xf0] sm:$0xff]
        %v301 = vld [vmem:[#allocation7 + $0xf8] sm:$0xff]
        %v302 = vld [vmem:[#allocation7 + $0x100] sm:$0xff]
        %v303 = vld [vmem:[#allocation7 + $0x108] sm:$0xff]
        %v304 = vld [vmem:[#allocation7 + $0x110] sm:$0xff]
        %v305 = vld [vmem:[#allocation7 + $0x118] sm:$0xff]
        %v306 = vld [vmem:[#allocation7 + $0x120] sm:$0xff]
        %v307 = vld [vmem:[#allocation7 + $0x128] sm:$0xff]
        %v308 = vld [vmem:[#allocation7 + $0x130] sm:$0xff]
        %v309 = vld [vmem:[#allocation7 + $0x138] sm:$0xff]
        %v310 = vld [vmem:[#allocation7 + $0x140] sm:$0xff]
        %v311 = vld [vmem:[#allocation7 + $0x148] sm:$0xff]
        %v312 = vld [vmem:[#allocation7 + $0x150] sm:$0xff]
        %v313 = vld [vmem:[#allocation7 + $0x158] sm:$0xff]
        %v314 = vld [vmem:[#allocation7 + $0x160] sm:$0xff]
        %v315 = vld [vmem:[#allocation7 + $0x168] sm:$0xff]
        %v316 = vld [vmem:[#allocation7 + $0x170] sm:$0xff]
        %v317 = vld [vmem:[#allocation7 + $0x178] sm:$0xff]
        %v318 = vld [vmem:[%s2] sm:$0x7]
        %v320 = vlaneseq
        %v321 = vshrl.u32 %v320, 7
        %v322 = vsub.s32 0, %v321
        %v323 = vrot.slane %v318, %v322
        %v324 = vlaneseq
        %v325 = vshrl.u32 %v324, 7
        %v326 = vsub.s32 1, %v325
        %v327 = vrot.slane %v318, %v326
        %v328 = vlaneseq
        %v329 = vshrl.u32 %v328, 7
        %v330 = vsub.s32 2, %v329
        %v331 = vrot.slane %v318, %v330
        %335 = vmatprep.subr.mxu0 %v271
        %336 = vmatpush1.msra.mxu0 %v270
        %337 = vmatprep.subr.mxu0 %v274
        %338 = vmatpush1.msra.mxu0 %v273
        %339 = vmatprep.subr.mxu0 %v277
        %340 = vmatpush1.msra.mxu0 %v276
        %341 = vmatprep.subr.mxu0 %v280
        %342 = vmatpush1.msra.mxu0 %v279
        %343 = vmatprep.subr.mxu0 %v283
        %344 = vmatpush1.msra.mxu0 %v282
        %345 = vmatprep.subr.mxu0 %v286
        %346 = vmatpush1.msra.mxu0 %v285
        %347 = vmatprep.subr.mxu0 %v289
        %348 = vmatpush1.msra.mxu0 %v288
        %349 = vmatprep.subr.mxu0 %v292
        %350 = vmatpush1.msra.mxu0 %v291
        %351 = vmatprep.subr.mxu0 %v295
        %352 = vmatpush1.msra.mxu0 %v294
        %353 = vmatprep.subr.mxu0 %v298
        %354 = vmatpush1.msra.mxu0 %v297
        %355 = vmatprep.subr.mxu0 %v301
        %356 = vmatpush1.msra.mxu0 %v300
        %357 = vmatprep.subr.mxu0 %v304
        %358 = vmatpush1.msra.mxu0 %v303
        %359 = vmatprep.subr.mxu0 %v307
        %360 = vmatpush1.msra.mxu0 %v306
        %361 = vmatprep.subr.mxu0 %v310
        %362 = vmatpush1.msra.mxu0 %v309
        %363 = vmatprep.subr.mxu0 %v313
        %364 = vmatpush1.msra.mxu0 %v312
        %365 = vmatprep.subr.mxu0 %v316
        %366 = vmatpush1.msra.mxu0 %v315
        %367 = vmatprep.subr.mxu0 0.0
        %368 = vmatpush1.msra.mxu0 0.0
        %369 = vmatprep.subr.mxu0 0.0
        %370 = vmatpush1.msra.mxu0 0.0
        %371 = vmatprep.subr.mxu0 0.0
        %372 = vmatpush1.msra.mxu0 0.0
        %373 = vmatprep.subr.mxu0 0.0
        %374 = vmatpush1.msra.mxu0 0.0
        %375 = vmatprep.subr.mxu0 0.0
        %376 = vmatpush1.msra.mxu0 0.0
        %377 = vmatprep.subr.mxu0 0.0
        %378 = vmatpush1.msra.mxu0 0.0
        %379 = vmatprep.subr.mxu0 0.0
        %380 = vmatpush1.msra.mxu0 0.0
        %381 = vmatprep.subr.mxu0 0.0
        %382 = vmatpush1.msra.mxu0 0.0
        %383 = vmatprep.subr.mxu0 0.0
        %384 = vmatpush1.msra.mxu0 0.0
        %385 = vmatprep.subr.mxu0 0.0
        %386 = vmatpush1.msra.mxu0 0.0
        %387 = vmatprep.subr.mxu0 0.0
        %388 = vmatpush1.msra.mxu0 0.0
        %389 = vmatprep.subr.mxu0 0.0
        %390 = vmatpush1.msra.mxu0 0.0
        %391 = vmatprep.subr.mxu0 0.0
        %392 = vmatpush1.msra.mxu0 0.0
        %393 = vmatprep.subr.mxu0 0.0
        %394 = vmatpush1.msra.mxu0 0.0
        %395 = vmatprep.subr.mxu0 0.0
        %396 = vmatpush1.msra.mxu0 0.0
        %397 = vmatprep.subr.mxu0 0.0
        %398 = vmatpush1.msra.mxu0 0.0
        %399 = vmatprep.mubr.f32.mxu0 0.0
        %400 = vmatmul.mubr.f32.gmra.mrb[0].mxu0 %v269
        %v401 = vpop.f32.mrb[0].mxu0
        %v402 = vadd.f32 %v323, %v401
        %v403 = vpop.f32.mrb[0].mxu0
        %v404 = vadd.f32 %v327, %v403
        %405 = vdwg.mxu0
        %406 = vmatprep.subr.mxu0 0.0
        %407 = vmatpush1.msra.mxu0 %v272
        %408 = vmatprep.subr.mxu0 0.0
        %409 = vmatpush1.msra.mxu0 %v275
        %410 = vmatprep.subr.mxu0 0.0
        %411 = vmatpush1.msra.mxu0 %v278
        %412 = vmatprep.subr.mxu0 0.0
        %413 = vmatpush1.msra.mxu0 %v281
        %414 = vmatprep.subr.mxu0 0.0
        %415 = vmatpush1.msra.mxu0 %v284
        %416 = vmatprep.subr.mxu0 0.0
        %417 = vmatpush1.msra.mxu0 %v287
        %418 = vmatprep.subr.mxu0 0.0
        %419 = vmatpush1.msra.mxu0 %v290
        %420 = vmatprep.subr.mxu0 0.0
        %421 = vmatpush1.msra.mxu0 %v293
        %422 = vmatprep.subr.mxu0 0.0
        %423 = vmatpush1.msra.mxu0 %v296
        %424 = vmatprep.subr.mxu0 0.0
        %425 = vmatpush1.msra.mxu0 %v299
        %426 = vmatprep.subr.mxu0 0.0
        %427 = vmatpush1.msra.mxu0 %v302
        %428 = vmatprep.subr.mxu0 0.0
        %429 = vmatpush1.msra.mxu0 %v305
        %430 = vmatprep.subr.mxu0 0.0
        %431 = vmatpush1.msra.mxu0 %v308
        %432 = vmatprep.subr.mxu0 0.0
        %433 = vmatpush1.msra.mxu0 %v311
        %434 = vmatprep.subr.mxu0 0.0
        %435 = vmatpush1.msra.mxu0 %v314
        %436 = vmatprep.subr.mxu0 0.0
        %437 = vmatpush1.msra.mxu0 %v317
        %438 = vmatprep.subr.mxu0 0.0
        %439 = vmatpush1.msra.mxu0 0.0
        %440 = vmatprep.subr.mxu0 0.0
        %441 = vmatpush1.msra.mxu0 0.0
        %442 = vmatprep.subr.mxu0 0.0
        %443 = vmatpush1.msra.mxu0 0.0
        %444 = vmatprep.subr.mxu0 0.0
        %445 = vmatpush1.msra.mxu0 0.0
        %446 = vmatprep.subr.mxu0 0.0
        %447 = vmatpush1.msra.mxu0 0.0
        %448 = vmatprep.subr.mxu0 0.0
        %449 = vmatpush1.msra.mxu0 0.0
        %450 = vmatprep.subr.mxu0 0.0
        %451 = vmatpush1.msra.mxu0 0.0
        %452 = vmatprep.subr.mxu0 0.0
        %453 = vmatpush1.msra.mxu0 0.0
        %454 = vmatprep.subr.mxu0 0.0
        %455 = vmatpush1.msra.mxu0 0.0
        %456 = vmatprep.subr.mxu0 0.0
        %457 = vmatpush1.msra.mxu0 0.0
        %458 = vmatprep.subr.mxu0 0.0
        %459 = vmatpush1.msra.mxu0 0.0
        %460 = vmatprep.subr.mxu0 0.0
        %461 = vmatpush1.msra.mxu0 0.0
        %462 = vmatprep.subr.mxu0 0.0
        %463 = vmatpush1.msra.mxu0 0.0
        %464 = vmatprep.subr.mxu0 0.0
        %465 = vmatpush1.msra.mxu0 0.0
        %466 = vmatprep.subr.mxu0 0.0
        %467 = vmatpush1.msra.mxu0 0.0
        %468 = vmatprep.subr.mxu0 0.0
        %469 = vmatpush1.msra.mxu0 0.0
        %470 = vmatprep.mubr.f32.mxu0 0.0
        %471 = vmatmul.mubr.f32.gmra.mrb[0].mxu0 %v269
        %v472 = vpop.f32.mrb[0].mxu0
        %v473 = vadd.f32 %v331, %v472
        %v474 = vpop.f32.mrb[0].mxu0
        %475 = vdwg.mxu0
        %476 = vst [vmem:[#allocation2] sm:$0xff] %v402
        %477 = vst [vmem:[#allocation2 + $0x8] sm:$0xff] %v404
        %478 = vst [vmem:[#allocation2 + $0x10] sm:$0xff] %v473
        %v479 = vld [vmem:[#allocation2] sm:$0xff]
        %v480 = vld [vmem:[#allocation2 + $0x8] sm:$0xff]
        %v481 = vld [vmem:[#allocation2 + $0x10] sm:$0xff]
        %vm482 = vcmask 261120
        %v484 = vsel %vm482, %v479, 0
        %v487 = vsel %vm482, %v480, 0
        %489 = vmatprep.subr.mxu0 0.0
        %490 = vmatpush1.xpose.msra.mxu0 %v487
        %491 = vmatprep.subr.mxu0 0.0
        %492 = vmatpush1.xpose.msra.mxu0 0.0
        %493 = vmatprep.subr.mxu0 0.0
        %494 = vmatpush1.xpose.msra.mxu0 0.0
        %495 = vmatprep.subr.mxu0 0.0
        %496 = vmatpush1.xpose.msra.mxu0 0.0
        %497 = vmatprep.subr.mxu0 0.0
        %498 = vmatpush1.xpose.msra.mxu0 0.0
        %499 = vmatprep.subr.mxu0 0.0
        %500 = vmatpush1.xpose.msra.mxu0 0.0
        %501 = vmatprep.subr.mxu0 0.0
        %502 = vmatpush1.xpose.msra.mxu0 0.0
        %503 = vmatprep.subr.mxu0 0.0
        %504 = vmatpush1.xpose.msra.mxu0 0.0
        %505 = vmatprep.subr.mxu0 0.0
        %506 = vmatpush1.xpose.msra.mxu0 0.0
        %507 = vmatprep.subr.mxu0 0.0
        %508 = vmatpush1.xpose.msra.mxu0 0.0
        %509 = vmatprep.subr.mxu0 0.0
        %510 = vmatpush1.xpose.msra.mxu0 0.0
        %511 = vmatprep.subr.mxu0 0.0
        %512 = vmatpush1.xpose.msra.mxu0 0.0
        %513 = vmatprep.subr.mxu0 0.0
        %514 = vmatpush1.xpose.msra.mxu0 0.0
        %515 = vmatprep.subr.mxu0 0.0
        %516 = vmatpush1.xpose.msra.mxu0 0.0
        %517 = vmatprep.subr.mxu0 0.0
        %518 = vmatpush1.xpose.msra.mxu0 0.0
        %519 = vmatprep.subr.mxu0 0.0
        %520 = vmatpush1.xpose.msra.mxu0 0.0
        %521 = vmatprep.subr.mxu0 0.0
        %522 = vmatpush1.xpose.msra.mxu0 0.0
        %523 = vmatprep.subr.mxu0 0.0
        %524 = vmatpush1.xpose.msra.mxu0 0.0
        %525 = vmatprep.subr.mxu0 0.0
        %526 = vmatpush1.xpose.msra.mxu0 0.0
        %527 = vmatprep.subr.mxu0 0.0
        %528 = vmatpush1.xpose.msra.mxu0 0.0
        %529 = vmatprep.subr.mxu0 0.0
        %530 = vmatpush1.xpose.msra.mxu0 0.0
        %531 = vmatprep.subr.mxu0 0.0
        %532 = vmatpush1.xpose.msra.mxu0 0.0
        %533 = vmatprep.subr.mxu0 0.0
        %534 = vmatpush1.xpose.msra.mxu0 0.0
        %535 = vmatprep.subr.mxu0 0.0
        %536 = vmatpush1.xpose.msra.mxu0 0.0
        %537 = vmatprep.subr.mxu0 0.0
        %538 = vmatpush1.xpose.msra.mxu0 0.0
        %539 = vmatprep.subr.mxu0 0.0
        %540 = vmatpush1.xpose.msra.mxu0 0.0
        %541 = vmatprep.subr.mxu0 0.0
        %542 = vmatpush1.xpose.msra.mxu0 0.0
        %543 = vmatprep.subr.mxu0 0.0
        %544 = vmatpush1.xpose.msra.mxu0 0.0
        %545 = vmatprep.subr.mxu0 0.0
        %546 = vmatpush1.xpose.msra.mxu0 0.0
        %547 = vmatprep.subr.mxu0 0.0
        %548 = vmatpush1.xpose.msra.mxu0 0.0
        %549 = vmatprep.subr.mxu0 0.0
        %550 = vmatpush1.xpose.msra.mxu0 0.0
        %551 = vmatprep.subr.mxu0 0.0
        %552 = vmatpush1.xpose.msra.mxu0 0.0
        %553 = vmatprep.mubr.f32.mxu0 0.0
        %554 = vmatmul.mubr.f32.gmra.mrb[0].mxu0 %v484
        %v555 = vpop.f32.mrb[0].mxu0
        %v556 = vadd.f32 0.0, %v555
        %v557 = vpop.f32.mrb[0].mxu0
        %558 = vdwg.mxu0
        %v559 = vmul.f32 %v556, 0.17677669
        %vm560 = vcmask 64512
        %v561 = vsel %vm560, %v559, -inf
        %562 = vmax.xlane.f32.xlu0 %v561
        %v563 = vpop.xlane.xlu0 %562
        %v564 = vsub.f32 %v559, %v563
        %v565 = vmul.f32 %v564, 1.442695
        %v566 = vpow.pop %v565
        %v567 = vsel %vm560, %v566, 0.0
        %568 = vadd.xlane.f32.xlu0 %v567
        %v569 = vpop.xlane.xlu0 %568
        %v570 = vrcp.pop %v569
        %v571 = vmul.f32 %v566, %v570
        %v573 = vsel %vm560, %v571, 0
        %575 = vmatprep.subr.mxu0 0.0
        %576 = vmatpush1.msra.mxu0 %v481
        %577 = vmatprep.subr.mxu0 0.0
        %578 = vmatpush1.msra.mxu0 0.0
        %579 = vmatprep.subr.mxu0 0.0
        %580 = vmatpush1.msra.mxu0 0.0
        %581 = vmatprep.subr.mxu0 0.0
        %582 = vmatpush1.msra.mxu0 0.0
        %583 = vmatprep.subr.mxu0 0.0
        %584 = vmatpush1.msra.mxu0 0.0
        %585 = vmatprep.subr.mxu0 0.0
        %586 = vmatpush1.msra.mxu0 0.0
        %587 = vmatprep.subr.mxu0 0.0
        %588 = vmatpush1.msra.mxu0 0.0
        %589 = vmatprep.subr.mxu0 0.0
        %590 = vmatpush1.msra.mxu0 0.0
        %591 = vmatprep.subr.mxu0 0.0
        %592 = vmatpush1.msra.mxu0 0.0
        %593 = vmatprep.subr.mxu0 0.0
        %594 = vmatpush1.msra.mxu0 0.0
        %595 = vmatprep.subr.mxu0 0.0
        %596 = vmatpush1.msra.mxu0 0.0
        %597 = vmatprep.subr.mxu0 0.0
        %598 = vmatpush1.msra.mxu0 0.0
        %599 = vmatprep.subr.mxu0 0.0
        %600 = vmatpush1.msra.mxu0 0.0
        %601 = vmatprep.subr.mxu0 0.0
        %602 = vmatpush1.msra.mxu0 0.0
        %603 = vmatprep.subr.mxu0 0.0
        %604 = vmatpush1.msra.mxu0 0.0
        %605 = vmatprep.subr.mxu0 0.0
        %606 = vmatpush1.msra.mxu0 0.0
        %607 = vmatprep.subr.mxu0 0.0
        %608 = vmatpush1.msra.mxu0 0.0
        %609 = vmatprep.subr.mxu0 0.0
        %610 = vmatpush1.msra.mxu0 0.0
        %611 = vmatprep.subr.mxu0 0.0
        %612 = vmatpush1.msra.mxu0 0.0
        %613 = vmatprep.subr.mxu0 0.0
        %614 = vmatpush1.msra.mxu0 0.0
        %615 = vmatprep.subr.mxu0 0.0
        %616 = vmatpush1.msra.mxu0 0.0
        %617 = vmatprep.subr.mxu0 0.0
        %618 = vmatpush1.msra.mxu0 0.0
        %619 = vmatprep.subr.mxu0 0.0
        %620 = vmatpush1.msra.mxu0 0.0
        %621 = vmatprep.subr.mxu0 0.0
        %622 = vmatpush1.msra.mxu0 0.0
        %623 = vmatprep.subr.mxu0 0.0
        %624 = vmatpush1.msra.mxu0 0.0
        %625 = vmatprep.subr.mxu0 0.0
        %626 = vmatpush1.msra.mxu0 0.0
        %627 = vmatprep.subr.mxu0 0.0
        %628 = vmatpush1.msra.mxu0 0.0
        %629 = vmatprep.subr.mxu0 0.0
        %630 = vmatpush1.msra.mxu0 0.0
        %631 = vmatprep.subr.mxu0 0.0
        %632 = vmatpush1.msra.mxu0 0.0
        %633 = vmatprep.subr.mxu0 0.0
        %634 = vmatpush1.msra.mxu0 0.0
        %635 = vmatprep.subr.mxu0 0.0
        %636 = vmatpush1.msra.mxu0 0.0
        %637 = vmatprep.subr.mxu0 0.0
        %638 = vmatpush1.msra.mxu0 0.0
        %639 = vmatprep.mubr.f32.mxu0 0.0
        %640 = vmatmul.mubr.f32.gmra.mrb[0].mxu0 %v573
        %v641 = vpop.f32.mrb[0].mxu0
        %v642 = vadd.f32 0.0, %v641
        %v643 = vpop.f32.mrb[0].mxu0
        %644 = vdwg.mxu0
        %645 = vst.msk [vmem:[#allocation3] sm:$0xff] %vm482, %v642
        %v646 = vld [vmem:[#allocation2] sm:$0xff]
        %v647 = vld [vmem:[#allocation2 + $0x8] sm:$0xff]
        %v648 = vld [vmem:[#allocation2 + $0x10] sm:$0xff]
        %650 = vrot.lane.b32.xlu0 %v646, 96
        %v651 = vpop.permute.xlu0 %650
        %653 = vrot.lane.b32.xlu0 %v647, 96
        %v654 = vpop.permute.xlu0 %653
        %v655 = vsel %vm482, %v651, 0
        %v657 = vsel %vm482, %v654, 0
        %659 = vmatprep.subr.mxu0 0.0
        %660 = vmatpush1.xpose.msra.mxu0 %v657
        %661 = vmatprep.subr.mxu0 0.0
        %662 = vmatpush1.xpose.msra.mxu0 0.0
        %663 = vmatprep.subr.mxu0 0.0
        %664 = vmatpush1.xpose.msra.mxu0 0.0
        %665 = vmatprep.subr.mxu0 0.0
        %666 = vmatpush1.xpose.msra.mxu0 0.0
        %667 = vmatprep.subr.mxu0 0.0
        %668 = vmatpush1.xpose.msra.mxu0 0.0
        %669 = vmatprep.subr.mxu0 0.0
        %670 = vmatpush1.xpose.msra.mxu0 0.0
        %671 = vmatprep.subr.mxu0 0.0
        %672 = vmatpush1.xpose.msra.mxu0 0.0
        %673 = vmatprep.subr.mxu0 0.0
        %674 = vmatpush1.xpose.msra.mxu0 0.0
        %675 = vmatprep.subr.mxu0 0.0
        %676 = vmatpush1.xpose.msra.mxu0 0.0
        %677 = vmatprep.subr.mxu0 0.0
        %678 = vmatpush1.xpose.msra.mxu0 0.0
        %679 = vmatprep.subr.mxu0 0.0
        %680 = vmatpush1.xpose.msra.mxu0 0.0
        %681 = vmatprep.subr.mxu0 0.0
        %682 = vmatpush1.xpose.msra.mxu0 0.0
        %683 = vmatprep.subr.mxu0 0.0
        %684 = vmatpush1.xpose.msra.mxu0 0.0
        %685 = vmatprep.subr.mxu0 0.0
        %686 = vmatpush1.xpose.msra.mxu0 0.0
        %687 = vmatprep.subr.mxu0 0.0
        %688 = vmatpush1.xpose.msra.mxu0 0.0
        %689 = vmatprep.subr.mxu0 0.0
        %690 = vmatpush1.xpose.msra.mxu0 0.0
        %691 = vmatprep.subr.mxu0 0.0
        %692 = vmatpush1.xpose.msra.mxu0 0.0
        %693 = vmatprep.subr.mxu0 0.0
        %694 = vmatpush1.xpose.msra.mxu0 0.0
        %695 = vmatprep.subr.mxu0 0.0
        %696 = vmatpush1.xpose.msra.mxu0 0.0
        %697 = vmatprep.subr.mxu0 0.0
        %698 = vmatpush1.xpose.msra.mxu0 0.0
        %699 = vmatprep.subr.mxu0 0.0
        %700 = vmatpush1.xpose.msra.mxu0 0.0
        %701 = vmatprep.subr.mxu0 0.0
        %702 = vmatpush1.xpose.msra.mxu0 0.0
        %703 = vmatprep.subr.mxu0 0.0
        %704 = vmatpush1.xpose.msra.mxu0 0.0
        %705 = vmatprep.subr.mxu0 0.0
        %706 = vmatpush1.xpose.msra.mxu0 0.0
        %707 = vmatprep.subr.mxu0 0.0
        %708 = vmatpush1.xpose.msra.mxu0 0.0
        %709 = vmatprep.subr.mxu0 0.0
        %710 = vmatpush1.xpose.msra.mxu0 0.0
        %711 = vmatprep.subr.mxu0 0.0
        %712 = vmatpush1.xpose.msra.mxu0 0.0
        %713 = vmatprep.subr.mxu0 0.0
        %714 = vmatpush1.xpose.msra.mxu0 0.0
        %715 = vmatprep.subr.mxu0 0.0
        %716 = vmatpush1.xpose.msra.mxu0 0.0
        %717 = vmatprep.subr.mxu0 0.0
        %718 = vmatpush1.xpose.msra.mxu0 0.0
        %719 = vmatprep.subr.mxu0 0.0
        %720 = vmatpush1.xpose.msra.mxu0 0.0
        %721 = vmatprep.subr.mxu0 0.0
        %722 = vmatpush1.xpose.msra.mxu0 0.0
        %723 = vmatprep.mubr.f32.mxu0 0.0
        %724 = vmatmul.mubr.f32.gmra.mrb[0].mxu0 %v655
        %v725 = vpop.f32.mrb[0].mxu0
        %v726 = vadd.f32 0.0, %v725
        %v727 = vpop.f32.mrb[0].mxu0
        %728 = vdwg.mxu0
        %v729 = vmul.f32 %v726, 0.17677669
        %v730 = vsel %vm560, %v729, -inf
        %731 = vmax.xlane.f32.xlu0 %v730
        %v732 = vpop.xlane.xlu0 %731
        %v733 = vsub.f32 %v729, %v732
        %v734 = vmul.f32 %v733, 1.442695
        %v735 = vpow.pop %v734
        %v736 = vsel %vm560, %v735, 0.0
        %737 = vadd.xlane.f32.xlu0 %v736
        %v738 = vpop.xlane.xlu0 %737
        %v739 = vrcp.pop %v738
        %v740 = vmul.f32 %v735, %v739
        %742 = vrot.lane.b32.xlu0 %v648, 96
        %v743 = vpop.permute.xlu0 %742
        %v746 = vsel %vm560, %v740, 0
        %748 = vmatprep.subr.mxu0 0.0
        %749 = vmatpush1.msra.mxu0 %v743
        %750 = vmatprep.subr.mxu0 0.0
        %751 = vmatpush1.msra.mxu0 0.0
        %752 = vmatprep.subr.mxu0 0.0
        %753 = vmatpush1.msra.mxu0 0.0
        %754 = vmatprep.subr.mxu0 0.0
        %755 = vmatpush1.msra.mxu0 0.0
        %756 = vmatprep.subr.mxu0 0.0
        %757 = vmatpush1.msra.mxu0 0.0
        %758 = vmatprep.subr.mxu0 0.0
        %759 = vmatpush1.msra.mxu0 0.0
        %760 = vmatprep.subr.mxu0 0.0
        %761 = vmatpush1.msra.mxu0 0.0
        %762 = vmatprep.subr.mxu0 0.0
        %763 = vmatpush1.msra.mxu0 0.0
        %764 = vmatprep.subr.mxu0 0.0
        %765 = vmatpush1.msra.mxu0 0.0
        %766 = vmatprep.subr.mxu0 0.0
        %767 = vmatpush1.msra.mxu0 0.0
        %768 = vmatprep.subr.mxu0 0.0
        %769 = vmatpush1.msra.mxu0 0.0
        %770 = vmatprep.subr.mxu0 0.0
        %771 = vmatpush1.msra.mxu0 0.0
        %772 = vmatprep.subr.mxu0 0.0
        %773 = vmatpush1.msra.mxu0 0.0
        %774 = vmatprep.subr.mxu0 0.0
        %775 = vmatpush1.msra.mxu0 0.0
        %776 = vmatprep.subr.mxu0 0.0
        %777 = vmatpush1.msra.mxu0 0.0
        %778 = vmatprep.subr.mxu0 0.0
        %779 = vmatpush1.msra.mxu0 0.0
        %780 = vmatprep.subr.mxu0 0.0
        %781 = vmatpush1.msra.mxu0 0.0
        %782 = vmatprep.subr.mxu0 0.0
        %783 = vmatpush1.msra.mxu0 0.0
        %784 = vmatprep.subr.mxu0 0.0
        %785 = vmatpush1.msra.mxu0 0.0
        %786 = vmatprep.subr.mxu0 0.0
        %787 = vmatpush1.msra.mxu0 0.0
        %788 = vmatprep.subr.mxu0 0.0
        %789 = vmatpush1.msra.mxu0 0.0
        %790 = vmatprep.subr.mxu0 0.0
        %791 = vmatpush1.msra.mxu0 0.0
        %792 = vmatprep.subr.mxu0 0.0
        %793 = vmatpush1.msra.mxu0 0.0
        %794 = vmatprep.subr.mxu0 0.0
        %795 = vmatpush1.msra.mxu0 0.0
        %796 = vmatprep.subr.mxu0 0.0
        %797 = vmatpush1.msra.mxu0 0.0
        %798 = vmatprep.subr.mxu0 0.0
        %799 = vmatpush1.msra.mxu0 0.0
        %800 = vmatprep.subr.mxu0 0.0
        %801 = vmatpush1.msra.mxu0 0.0
        %802 = vmatprep.subr.mxu0 0.0
        %803 = vmatpush1.msra.mxu0 0.0
        %804 = vmatprep.subr.mxu0 0.0
        %805 = vmatpush1.msra.mxu0 0.0
        %806 = vmatprep.subr.mxu0 0.0
        %807 = vmatpush1.msra.mxu0 0.0
        %808 = vmatprep.subr.mxu0 0.0
        %809 = vmatpush1.msra.mxu0 0.0
        %810 = vmatprep.subr.mxu0 0.0
        %811 = vmatpush1.msra.mxu0 0.0
        %812 = vmatprep.mubr.f32.mxu0 0.0
        %813 = vmatmul.mubr.f32.gmra.mrb[0].mxu0 %v746
        %v814 = vpop.f32.mrb[0].mxu0
        %v815 = vadd.f32 0.0, %v814
        %v816 = vpop.f32.mrb[0].mxu0
        %817 = vdwg.mxu0
        %819 = vrot.lane.b32.xlu0 %v815, 32
        %v820 = vpop.permute.xlu0 %819
        %vm822 = vcmask 523520
        %823 = vst.msk [vmem:[#allocation3] sm:$0xff] %vm822, %v820
        %v824 = vld [vmem:[#allocation2] sm:$0xff]
        %v825 = vld [vmem:[#allocation2 + $0x8] sm:$0xff]
        %v826 = vld [vmem:[#allocation2 + $0x10] sm:$0xff]
        %828 = vrot.lane.b32.xlu0 %v824, 64
        %v829 = vpop.permute.xlu0 %828
        %831 = vrot.lane.b32.xlu0 %v825, 64
        %v832 = vpop.permute.xlu0 %831
        %v833 = vsel %vm482, %v829, 0
        %v835 = vsel %vm482, %v832, 0
        %837 = vmatprep.subr.mxu0 0.0
        %838 = vmatpush1.xpose.msra.mxu0 %v835
        %839 = vmatprep.subr.mxu0 0.0
        %840 = vmatpush1.xpose.msra.mxu0 0.0
        %841 = vmatprep.subr.mxu0 0.0
        %842 = vmatpush1.xpose.msra.mxu0 0.0
        %843 = vmatprep.subr.mxu0 0.0
        %844 = vmatpush1.xpose.msra.mxu0 0.0
        %845 = vmatprep.subr.mxu0 0.0
        %846 = vmatpush1.xpose.msra.mxu0 0.0
        %847 = vmatprep.subr.mxu0 0.0
        %848 = vmatpush1.xpose.msra.mxu0 0.0
        %849 = vmatprep.subr.mxu0 0.0
        %850 = vmatpush1.xpose.msra.mxu0 0.0
        %851 = vmatprep.subr.mxu0 0.0
        %852 = vmatpush1.xpose.msra.mxu0 0.0
        %853 = vmatprep.subr.mxu0 0.0
        %854 = vmatpush1.xpose.msra.mxu0 0.0
        %855 = vmatprep.subr.mxu0 0.0
        %856 = vmatpush1.xpose.msra.mxu0 0.0
        %857 = vmatprep.subr.mxu0 0.0
        %858 = vmatpush1.xpose.msra.mxu0 0.0
        %859 = vmatprep.subr.mxu0 0.0
        %860 = vmatpush1.xpose.msra.mxu0 0.0
        %861 = vmatprep.subr.mxu0 0.0
        %862 = vmatpush1.xpose.msra.mxu0 0.0
        %863 = vmatprep.subr.mxu0 0.0
        %864 = vmatpush1.xpose.msra.mxu0 0.0
        %865 = vmatprep.subr.mxu0 0.0
        %866 = vmatpush1.xpose.msra.mxu0 0.0
        %867 = vmatprep.subr.mxu0 0.0
        %868 = vmatpush1.xpose.msra.mxu0 0.0
        %869 = vmatprep.subr.mxu0 0.0
        %870 = vmatpush1.xpose.msra.mxu0 0.0
        %871 = vmatprep.subr.mxu0 0.0
        %872 = vmatpush1.xpose.msra.mxu0 0.0
        %873 = vmatprep.subr.mxu0 0.0
        %874 = vmatpush1.xpose.msra.mxu0 0.0
        %875 = vmatprep.subr.mxu0 0.0
        %876 = vmatpush1.xpose.msra.mxu0 0.0
        %877 = vmatprep.subr.mxu0 0.0
        %878 = vmatpush1.xpose.msra.mxu0 0.0
        %879 = vmatprep.subr.mxu0 0.0
        %880 = vmatpush1.xpose.msra.mxu0 0.0
        %881 = vmatprep.subr.mxu0 0.0
        %882 = vmatpush1.xpose.msra.mxu0 0.0
        %883 = vmatprep.subr.mxu0 0.0
        %884 = vmatpush1.xpose.msra.mxu0 0.0
        %885 = vmatprep.subr.mxu0 0.0
        %886 = vmatpush1.xpose.msra.mxu0 0.0
        %887 = vmatprep.subr.mxu0 0.0
        %888 = vmatpush1.xpose.msra.mxu0 0.0
        %889 = vmatprep.subr.mxu0 0.0
        %890 = vmatpush1.xpose.msra.mxu0 0.0
        %891 = vmatprep.subr.mxu0 0.0
        %892 = vmatpush1.xpose.msra.mxu0 0.0
        %893 = vmatprep.subr.mxu0 0.0
        %894 = vmatpush1.xpose.msra.mxu0 0.0
        %895 = vmatprep.subr.mxu0 0.0
        %896 = vmatpush1.xpose.msra.mxu0 0.0
        %897 = vmatprep.subr.mxu0 0.0
        %898 = vmatpush1.xpose.msra.mxu0 0.0
        %899 = vmatprep.subr.mxu0 0.0
        %900 = vmatpush1.xpose.msra.mxu0 0.0
        %901 = vmatprep.mubr.f32.mxu0 0.0
        %902 = vmatmul.mubr.f32.gmra.mrb[0].mxu0 %v833
        %v903 = vpop.f32.mrb[0].mxu0
        %v904 = vadd.f32 0.0, %v903
        %v905 = vpop.f32.mrb[0].mxu0
        %906 = vdwg.mxu0
        %v907 = vmul.f32 %v904, 0.17677669
        %v908 = vsel %vm560, %v907, -inf
        %909 = vmax.xlane.f32.xlu0 %v908
        %v910 = vpop.xlane.xlu0 %909
        %v911 = vsub.f32 %v907, %v910
        %v912 = vmul.f32 %v911, 1.442695
        %v913 = vpow.pop %v912
        %v914 = vsel %vm560, %v913, 0.0
        %915 = vadd.xlane.f32.xlu0 %v914
        %v916 = vpop.xlane.xlu0 %915
        %v917 = vrcp.pop %v916
        %v918 = vmul.f32 %v913, %v917
        %920 = vrot.lane.b32.xlu0 %v826, 64
        %v921 = vpop.permute.xlu0 %920
        %v924 = vsel %vm560, %v918, 0
        %926 = vmatprep.subr.mxu0 0.0
        %927 = vmatpush1.msra.mxu0 %v921
        %928 = vmatprep.subr.mxu0 0.0
        %929 = vmatpush1.msra.mxu0 0.0
        %930 = vmatprep.subr.mxu0 0.0
        %931 = vmatpush1.msra.mxu0 0.0
        %932 = vmatprep.subr.mxu0 0.0
        %933 = vmatpush1.msra.mxu0 0.0
        %934 = vmatprep.subr.mxu0 0.0
        %935 = vmatpush1.msra.mxu0 0.0
        %936 = vmatprep.subr.mxu0 0.0
        %937 = vmatpush1.msra.mxu0 0.0
        %938 = vmatprep.subr.mxu0 0.0
        %939 = vmatpush1.msra.mxu0 0.0
        %940 = vmatprep.subr.mxu0 0.0
        %941 = vmatpush1.msra.mxu0 0.0
        %942 = vmatprep.subr.mxu0 0.0
        %943 = vmatpush1.msra.mxu0 0.0
        %944 = vmatprep.subr.mxu0 0.0
        %945 = vmatpush1.msra.mxu0 0.0
        %946 = vmatprep.subr.mxu0 0.0
        %947 = vmatpush1.msra.mxu0 0.0
        %948 = vmatprep.subr.mxu0 0.0
        %949 = vmatpush1.msra.mxu0 0.0
        %950 = vmatprep.subr.mxu0 0.0
        %951 = vmatpush1.msra.mxu0 0.0
        %952 = vmatprep.subr.mxu0 0.0
        %953 = vmatpush1.msra.mxu0 0.0
        %954 = vmatprep.subr.mxu0 0.0
        %955 = vmatpush1.msra.mxu0 0.0
        %956 = vmatprep.subr.mxu0 0.0
        %957 = vmatpush1.msra.mxu0 0.0
        %958 = vmatprep.subr.mxu0 0.0
        %959 = vmatpush1.msra.mxu0 0.0
        %960 = vmatprep.subr.mxu0 0.0
        %961 = vmatpush1.msra.mxu0 0.0
        %962 = vmatprep.subr.mxu0 0.0
        %963 = vmatpush1.msra.mxu0 0.0
        %964 = vmatprep.subr.mxu0 0.0
        %965 = vmatpush1.msra.mxu0 0.0
        %966 = vmatprep.subr.mxu0 0.0
        %967 = vmatpush1.msra.mxu0 0.0
        %968 = vmatprep.subr.mxu0 0.0
        %969 = vmatpush1.msra.mxu0 0.0
        %970 = vmatprep.subr.mxu0 0.0
        %971 = vmatpush1.msra.mxu0 0.0
        %972 = vmatprep.subr.mxu0 0.0
        %973 = vmatpush1.msra.mxu0 0.0
        %974 = vmatprep.subr.mxu0 0.0
        %975 = vmatpush1.msra.mxu0 0.0
        %976 = vmatprep.subr.mxu0 0.0
        %977 = vmatpush1.msra.mxu0 0.0
        %978 = vmatprep.subr.mxu0 0.0
        %979 = vmatpush1.msra.mxu0 0.0
        %980 = vmatprep.subr.mxu0 0.0
        %981 = vmatpush1.msra.mxu0 0.0
        %982 = vmatprep.subr.mxu0 0.0
        %983 = vmatpush1.msra.mxu0 0.0
        %984 = vmatprep.subr.mxu0 0.0
        %985 = vmatpush1.msra.mxu0 0.0
        %986 = vmatprep.subr.mxu0 0.0
        %987 = vmatpush1.msra.mxu0 0.0
        %988 = vmatprep.subr.mxu0 0.0
        %989 = vmatpush1.msra.mxu0 0.0
        %990 = vmatprep.mubr.f32.mxu0 0.0
        %991 = vmatmul.mubr.f32.gmra.mrb[0].mxu0 %v924
        %v992 = vpop.f32.mrb[0].mxu0
        %v993 = vadd.f32 0.0, %v992
        %v994 = vpop.f32.mrb[0].mxu0
        %995 = vdwg.mxu0
        %997 = vrot.lane.b32.xlu0 %v993, 64
        %v998 = vpop.permute.xlu0 %997
        %vm1000 = vcmask 785920
        %1001 = vst.msk [vmem:[#allocation3] sm:$0xff] %vm1000, %v998
        %v1002 = vld [vmem:[#allocation2] sm:$0xff]
        %v1003 = vld [vmem:[#allocation2 + $0x8] sm:$0xff]
        %v1004 = vld [vmem:[#allocation2 + $0x10] sm:$0xff]
        %1006 = vrot.lane.b32.xlu0 %v1002, 32
        %v1007 = vpop.permute.xlu0 %1006
        %1009 = vrot.lane.b32.xlu0 %v1003, 32
        %v1010 = vpop.permute.xlu0 %1009
        %v1011 = vsel %vm482, %v1007, 0
        %v1013 = vsel %vm482, %v1010, 0
        %1015 = vmatprep.subr.mxu0 0.0
        %1016 = vmatpush1.xpose.msra.mxu0 %v1013
        %1017 = vmatprep.subr.mxu0 0.0
        %1018 = vmatpush1.xpose.msra.mxu0 0.0
        %1019 = vmatprep.subr.mxu0 0.0
        %1020 = vmatpush1.xpose.msra.mxu0 0.0
        %1021 = vmatprep.subr.mxu0 0.0
        %1022 = vmatpush1.xpose.msra.mxu0 0.0
        %1023 = vmatprep.subr.mxu0 0.0
        %1024 = vmatpush1.xpose.msra.mxu0 0.0
        %1025 = vmatprep.subr.mxu0 0.0
        %1026 = vmatpush1.xpose.msra.mxu0 0.0
        %1027 = vmatprep.subr.mxu0 0.0
        %1028 = vmatpush1.xpose.msra.mxu0 0.0
        %1029 = vmatprep.subr.mxu0 0.0
        %1030 = vmatpush1.xpose.msra.mxu0 0.0
        %1031 = vmatprep.subr.mxu0 0.0
        %1032 = vmatpush1.xpose.msra.mxu0 0.0
        %1033 = vmatprep.subr.mxu0 0.0
        %1034 = vmatpush1.xpose.msra.mxu0 0.0
        %1035 = vmatprep.subr.mxu0 0.0
        %1036 = vmatpush1.xpose.msra.mxu0 0.0
        %1037 = vmatprep.subr.mxu0 0.0
        %1038 = vmatpush1.xpose.msra.mxu0 0.0
        %1039 = vmatprep.subr.mxu0 0.0
        %1040 = vmatpush1.xpose.msra.mxu0 0.0
        %1041 = vmatprep.subr.mxu0 0.0
        %1042 = vmatpush1.xpose.msra.mxu0 0.0
        %1043 = vmatprep.subr.mxu0 0.0
        %1044 = vmatpush1.xpose.msra.mxu0 0.0
        %1045 = vmatprep.subr.mxu0 0.0
        %1046 = vmatpush1.xpose.msra.mxu0 0.0
        %1047 = vmatprep.subr.mxu0 0.0
        %1048 = vmatpush1.xpose.msra.mxu0 0.0
        %1049 = vmatprep.subr.mxu0 0.0
        %1050 = vmatpush1.xpose.msra.mxu0 0.0
        %1051 = vmatprep.subr.mxu0 0.0
        %1052 = vmatpush1.xpose.msra.mxu0 0.0
        %1053 = vmatprep.subr.mxu0 0.0
        %1054 = vmatpush1.xpose.msra.mxu0 0.0
        %1055 = vmatprep.subr.mxu0 0.0
        %1056 = vmatpush1.xpose.msra.mxu0 0.0
        %1057 = vmatprep.subr.mxu0 0.0
        %1058 = vmatpush1.xpose.msra.mxu0 0.0
        %1059 = vmatprep.subr.mxu0 0.0
        %1060 = vmatpush1.xpose.msra.mxu0 0.0
        %1061 = vmatprep.subr.mxu0 0.0
        %1062 = vmatpush1.xpose.msra.mxu0 0.0
        %1063 = vmatprep.subr.mxu0 0.0
        %1064 = vmatpush1.xpose.msra.mxu0 0.0
        %1065 = vmatprep.subr.mxu0 0.0
        %1066 = vmatpush1.xpose.msra.mxu0 0.0
        %1067 = vmatprep.subr.mxu0 0.0
        %1068 = vmatpush1.xpose.msra.mxu0 0.0
        %1069 = vmatprep.subr.mxu0 0.0
        %1070 = vmatpush1.xpose.msra.mxu0 0.0
        %1071 = vmatprep.subr.mxu0 0.0
        %1072 = vmatpush1.xpose.msra.mxu0 0.0
        %1073 = vmatprep.subr.mxu0 0.0
        %1074 = vmatpush1.xpose.msra.mxu0 0.0
        %1075 = vmatprep.subr.mxu0 0.0
        %1076 = vmatpush1.xpose.msra.mxu0 0.0
        %1077 = vmatprep.subr.mxu0 0.0
        %1078 = vmatpush1.xpose.msra.mxu0 0.0
        %1079 = vmatprep.mubr.f32.mxu0 0.0
        %1080 = vmatmul.mubr.f32.gmra.mrb[0].mxu0 %v1011
        %v1081 = vpop.f32.mrb[0].mxu0
        %v1082 = vadd.f32 0.0, %v1081
        %v1083 = vpop.f32.mrb[0].mxu0
        %1084 = vdwg.mxu0
        %v1085 = vmul.f32 %v1082, 0.17677669
        %v1086 = vsel %vm560, %v1085, -inf
        %1087 = vmax.xlane.f32.xlu0 %v1086
        %v1088 = vpop.xlane.xlu0 %1087
        %v1089 = vsub.f32 %v1085, %v1088
        %v1090 = vmul.f32 %v1089, 1.442695
        %v1091 = vpow.pop %v1090
        %v1092 = vsel %vm560, %v1091, 0.0
        %1093 = vadd.xlane.f32.xlu0 %v1092
        %v1094 = vpop.xlane.xlu0 %1093
        %v1095 = vrcp.pop %v1094
        %v1096 = vmul.f32 %v1091, %v1095
        %1098 = vrot.lane.b32.xlu0 %v1004, 32
        %v1099 = vpop.permute.xlu0 %1098
        %v1102 = vsel %vm560, %v1096, 0
        %1104 = vmatprep.subr.mxu0 0.0
        %1105 = vmatpush1.msra.mxu0 %v1099
        %1106 = vmatprep.subr.mxu0 0.0
        %1107 = vmatpush1.msra.mxu0 0.0
        %1108 = vmatprep.subr.mxu0 0.0
        %1109 = vmatpush1.msra.mxu0 0.0
        %1110 = vmatprep.subr.mxu0 0.0
        %1111 = vmatpush1.msra.mxu0 0.0
        %1112 = vmatprep.subr.mxu0 0.0
        %1113 = vmatpush1.msra.mxu0 0.0
        %1114 = vmatprep.subr.mxu0 0.0
        %1115 = vmatpush1.msra.mxu0 0.0
        %1116 = vmatprep.subr.mxu0 0.0
        %1117 = vmatpush1.msra.mxu0 0.0
        %1118 = vmatprep.subr.mxu0 0.0
        %1119 = vmatpush1.msra.mxu0 0.0
        %1120 = vmatprep.subr.mxu0 0.0
        %1121 = vmatpush1.msra.mxu0 0.0
        %1122 = vmatprep.subr.mxu0 0.0
        %1123 = vmatpush1.msra.mxu0 0.0
        %1124 = vmatprep.subr.mxu0 0.0
        %1125 = vmatpush1.msra.mxu0 0.0
        %1126 = vmatprep.subr.mxu0 0.0
        %1127 = vmatpush1.msra.mxu0 0.0
        %1128 = vmatprep.subr.mxu0 0.0
        %1129 = vmatpush1.msra.mxu0 0.0
        %1130 = vmatprep.subr.mxu0 0.0
        %1131 = vmatpush1.msra.mxu0 0.0
        %1132 = vmatprep.subr.mxu0 0.0
        %1133 = vmatpush1.msra.mxu0 0.0
        %1134 = vmatprep.subr.mxu0 0.0
        %1135 = vmatpush1.msra.mxu0 0.0
        %1136 = vmatprep.subr.mxu0 0.0
        %1137 = vmatpush1.msra.mxu0 0.0
        %1138 = vmatprep.subr.mxu0 0.0
        %1139 = vmatpush1.msra.mxu0 0.0
        %1140 = vmatprep.subr.mxu0 0.0
        %1141 = vmatpush1.msra.mxu0 0.0
        %1142 = vmatprep.subr.mxu0 0.0
        %1143 = vmatpush1.msra.mxu0 0.0
        %1144 = vmatprep.subr.mxu0 0.0
        %1145 = vmatpush1.msra.mxu0 0.0
        %1146 = vmatprep.subr.mxu0 0.0
        %1147 = vmatpush1.msra.mxu0 0.0
        %1148 = vmatprep.subr.mxu0 0.0
        %1149 = vmatpush1.msra.mxu0 0.0
        %1150 = vmatprep.subr.mxu0 0.0
        %1151 = vmatpush1.msra.mxu0 0.0
        %1152 = vmatprep.subr.mxu0 0.0
        %1153 = vmatpush1.msra.mxu0 0.0
        %1154 = vmatprep.subr.mxu0 0.0
        %1155 = vmatpush1.msra.mxu0 0.0
        %1156 = vmatprep.subr.mxu0 0.0
        %1157 = vmatpush1.msra.mxu0 0.0
        %1158 = vmatprep.subr.mxu0 0.0
        %1159 = vmatpush1.msra.mxu0 0.0
        %1160 = vmatprep.subr.mxu0 0.0
        %1161 = vmatpush1.msra.mxu0 0.0
        %1162 = vmatprep.subr.mxu0 0.0
        %1163 = vmatpush1.msra.mxu0 0.0
        %1164 = vmatprep.subr.mxu0 0.0
        %1165 = vmatpush1.msra.mxu0 0.0
        %1166 = vmatprep.subr.mxu0 0.0
        %1167 = vmatpush1.msra.mxu0 0.0
        %1168 = vmatprep.mubr.f32.mxu0 0.0
        %1169 = vmatmul.mubr.f32.gmra.mrb[0].mxu0 %v1102
        %v1170 = vpop.f32.mrb[0].mxu0
        %v1171 = vadd.f32 0.0, %v1170
        %v1172 = vpop.f32.mrb[0].mxu0
        %1173 = vdwg.mxu0
        %1175 = vrot.lane.b32.xlu0 %v1171, 96
        %v1176 = vpop.permute.xlu0 %1175
        %vm1178 = vcmask 1048320
        %1179 = vst.msk [vmem:[#allocation3] sm:$0xff] %vm1178, %v1176
        %v1180 = vld [vmem:[#allocation3] sm:$0xff]
        %v1181 = vld [vmem:[#allocation9] sm:$0xff]
        %v1182 = vld [vmem:[#allocation9 + $0x8] sm:$0xff]
        %v1183 = vld [vmem:[#allocation9 + $0x10] sm:$0xff]
        %v1184 = vld [vmem:[#allocation9 + $0x18] sm:$0xff]
        %v1185 = vld [vmem:[#allocation9 + $0x20] sm:$0xff]
        %v1186 = vld [vmem:[#allocation9 + $0x28] sm:$0xff]
        %v1187 = vld [vmem:[#allocation9 + $0x30] sm:$0xff]
        %v1188 = vld [vmem:[#allocation9 + $0x38] sm:$0xff]
        %v1189 = vld [vmem:[#allocation9 + $0x40] sm:$0xff]
        %v1190 = vld [vmem:[#allocation9 + $0x48] sm:$0xff]
        %v1191 = vld [vmem:[#allocation9 + $0x50] sm:$0xff]
        %v1192 = vld [vmem:[#allocation9 + $0x58] sm:$0xff]
        %v1193 = vld [vmem:[#allocation9 + $0x60] sm:$0xff]
        %v1194 = vld [vmem:[#allocation9 + $0x68] sm:$0xff]
        %v1195 = vld [vmem:[#allocation9 + $0x70] sm:$0xff]
        %v1196 = vld [vmem:[#allocation9 + $0x78] sm:$0xff]
        %v1197 = vld [vmem:[%s4] sm:$0x1]
        %v1199 = vlaneseq
        %v1200 = vshrl.u32 %v1199, 7
        %v1201 = vsub.s32 0, %v1200
        %v1202 = vrot.slane %v1197, %v1201
        %1204 = vmatprep.subr.mxu0 0.0
        %1205 = vmatpush1.msra.mxu0 %v1181
        %1206 = vmatprep.subr.mxu0 0.0
        %1207 = vmatpush1.msra.mxu0 %v1182
        %1208 = vmatprep.subr.mxu0 0.0
        %1209 = vmatpush1.msra.mxu0 %v1183
        %1210 = vmatprep.subr.mxu0 0.0
        %1211 = vmatpush1.msra.mxu0 %v1184
        %1212 = vmatprep.subr.mxu0 0.0
        %1213 = vmatpush1.msra.mxu0 %v1185
        %1214 = vmatprep.subr.mxu0 0.0
        %1215 = vmatpush1.msra.mxu0 %v1186
        %1216 = vmatprep.subr.mxu0 0.0
        %1217 = vmatpush1.msra.mxu0 %v1187
        %1218 = vmatprep.subr.mxu0 0.0
        %1219 = vmatpush1.msra.mxu0 %v1188
        %1220 = vmatprep.subr.mxu0 0.0
        %1221 = vmatpush1.msra.mxu0 %v1189
        %1222 = vmatprep.subr.mxu0 0.0
        %1223 = vmatpush1.msra.mxu0 %v1190
        %1224 = vmatprep.subr.mxu0 0.0
        %1225 = vmatpush1.msra.mxu0 %v1191
        %1226 = vmatprep.subr.mxu0 0.0
        %1227 = vmatpush1.msra.mxu0 %v1192
        %1228 = vmatprep.subr.mxu0 0.0
        %1229 = vmatpush1.msra.mxu0 %v1193
        %1230 = vmatprep.subr.mxu0 0.0
        %1231 = vmatpush1.msra.mxu0 %v1194
        %1232 = vmatprep.subr.mxu0 0.0
        %1233 = vmatpush1.msra.mxu0 %v1195
        %1234 = vmatprep.subr.mxu0 0.0
        %1235 = vmatpush1.msra.mxu0 %v1196
        %1236 = vmatprep.subr.mxu0 0.0
        %1237 = vmatpush1.msra.mxu0 0.0
        %1238 = vmatprep.subr.mxu0 0.0
        %1239 = vmatpush1.msra.mxu0 0.0
        %1240 = vmatprep.subr.mxu0 0.0
        %1241 = vmatpush1.msra.mxu0 0.0
        %1242 = vmatprep.subr.mxu0 0.0
        %1243 = vmatpush1.msra.mxu0 0.0
        %1244 = vmatprep.subr.mxu0 0.0
        %1245 = vmatpush1.msra.mxu0 0.0
        %1246 = vmatprep.subr.mxu0 0.0
        %1247 = vmatpush1.msra.mxu0 0.0
        %1248 = vmatprep.subr.mxu0 0.0
        %1249 = vmatpush1.msra.mxu0 0.0
        %1250 = vmatprep.subr.mxu0 0.0
        %1251 = vmatpush1.msra.mxu0 0.0
        %1252 = vmatprep.subr.mxu0 0.0
        %1253 = vmatpush1.msra.mxu0 0.0
        %1254 = vmatprep.subr.mxu0 0.0
        %1255 = vmatpush1.msra.mxu0 0.0
        %1256 = vmatprep.subr.mxu0 0.0
        %1257 = vmatpush1.msra.mxu0 0.0
        %1258 = vmatprep.subr.mxu0 0.0
        %1259 = vmatpush1.msra.mxu0 0.0
        %1260 = vmatprep.subr.mxu0 0.0
        %1261 = vmatpush1.msra.mxu0 0.0
        %1262 = vmatprep.subr.mxu0 0.0
        %1263 = vmatpush1.msra.mxu0 0.0
        %1264 = vmatprep.subr.mxu0 0.0
        %1265 = vmatpush1.msra.mxu0 0.0
        %1266 = vmatprep.subr.mxu0 0.0
        %1267 = vmatpush1.msra.mxu0 0.0
        %1268 = vmatprep.mubr.f32.mxu0 0.0
        %1269 = vmatmul.mubr.f32.gmra.mrb[0].mxu0 %v1180
        %v1270 = vpop.f32.mrb[0].mxu0
        %v1271 = vadd.f32 %v1202, %v1270
        %v1272 = vpop.f32.mrb[0].mxu0
        %1273 = vdwg.mxu0
        %1274 = vst [vmem:[%s268] sm:$0xff] %v1271
        %s1275 = sand.u32 %s141, 1
        %s1276 = scalar_lea.sflag [#allocation6], %s1275
        %s1277 = sand.u32 %s141, 1
        %s1278 = smul.addr %s1277, 8
        %s1279 = scalar_lea.vmem [#allocation10], %s1278
        // Predicated region
        $region53: #{tpu_custom_call.1} parent=39 // pred_check
          %p1280 = pneg %p151
        $region54: #{tpu_custom_call.1} parent=39 // pred_check_branch
          %1282 = sbr.rel (%p1280) target = $region56
        $region55: #{tpu_custom_call.1} parent=39 // pred_region
          %s1284 = ssub.s32 128, 128
          %1285 = vsyncadd %s1276, %s1284
          %s1286 = smul.addr %s23, 128
          %s1287 = scalar_lea.hbm %s5, %s1286
          %s1289 = sshll.u32 %s1279, 4
          %s1290 = int_to_ptr.vmem [resolvable:$true] %s1289
          %1292 = dma.vmem_to_hbm [thread:$0]  %s1290, 128, %s1287, %s1276
        $region56: #{tpu_custom_call.1} parent=39 // pred_fallthru
          _
      $region40: #{tpu_custom_call.1} parent=5 // pred_fallthru
        _
      %p1293 = scmp.le.s32.totalorder 2, %s18
      // Predicated region
      $region57: #{tpu_custom_call.1} parent=5 // pred_check
        %p1294 = pneg %p1293
      $region58: #{tpu_custom_call.1} parent=5 // pred_check_branch
        %1296 = sbr.rel (%p1294) target = $region60
      $region59: #{tpu_custom_call.1} parent=5 // pred_region
        %s1297 = ssub.s32 %s18, 2
        // Predicated region
        $region61: #{tpu_custom_call.1} parent=59 // pred_check
          %p1298 = pneg %p157
        $region62: #{tpu_custom_call.1} parent=59 // pred_check_branch
          %1300 = sbr.rel (%p1298) target = $region64
        $region63: #{tpu_custom_call.1} parent=59 // pred_region
          %s1301 = sand.u32 %s142, 1
          %s1302 = scalar_lea.sflag [#allocation6], %s1301
          %s1303 = sand.u32 %s142, 1
          %s1304 = smul.addr %s1303, 8
          %s1305 = scalar_lea.vmem [#allocation10], %s1304
          %1306 = dma.done %s1302, 128
        $region64: #{tpu_custom_call.1} parent=59 // pred_fallthru
          _
      $region60: #{tpu_custom_call.1} parent=5 // pred_fallthru
        _
    $region6: #{tpu_custom_call.1} parent=1 // loop_footer
      %s22 = sadd.s32 1, %s18
    $region7: #{tpu_custom_call.1} parent=1 // loop_footer_branch
      %17 = sbr.rel target = $region3
    $region8: #{tpu_custom_call.1} parent=1 // loop_exit
      _
    %1307 = vsyncpa [#allocation5], 1
    %s1308 = scalar_lea.sflag [#allocation5], 1
    %1309 = vsyncpa %s1308, 1
    %1310 = vsyncpa [#allocation8], 1
    %1311 = vsyncpa [#allocation6], 1
    %s1312 = scalar_lea.sflag [#allocation6], 1
    %1313 = vsyncpa %s1312, 1

</llo_original>
